<compile_context>
chip_gen: v7x
topology: tpu7x:2x2x1
jax: 0.10.0
libtpu: 0.0.40
codegen_flags: <defaults>
</compile_context>

<pallas_src>
import functools
import numpy as np
import jax
import jax.numpy as jnp
from jax.experimental import pallas as pl
from jax.experimental.pallas import tpu as pltpu


# ----------------------------------------------------------------------------
# Host-side precompute of the StronglyEntanglingLayers unitaries.
# (Parameter-only / input-independent glue: no Pallas equivalent needed.)
# ----------------------------------------------------------------------------
def _rz(a):
    return np.array([[np.exp(-0.5j * a), 0.0], [0.0, np.exp(0.5j * a)]],
                    dtype=np.complex128)


def _ry(a):
    c, s = np.cos(a / 2.0), np.sin(a / 2.0)
    return np.array([[c, -s], [s, c]], dtype=np.complex128)


def _rot(phi, theta, omega):
    # qml.Rot(phi, theta, omega) == RZ(omega) @ RY(theta) @ RZ(phi)
    return _rz(omega) @ _ry(theta) @ _rz(phi)


def _cz_diag(n_wires, a, b):
    dim = 2 ** n_wires
    d = np.ones(dim, dtype=np.complex128)
    for s in range(dim):
        if ((s >> (n_wires - 1 - a)) & 1) and ((s >> (n_wires - 1 - b)) & 1):
            d[s] = -1.0
    return d


def strongly_entangling_unitary(w):
    """w: (L_sel, M, 3) -> full 2^M x 2^M unitary of qml.StronglyEntanglingLayers
    (imprimitive=CZ, default ranges r_l = l % (M-1) + 1). Wire 0 = MSB."""
    l_sel, n_wires, _ = w.shape
    dim = 2 ** n_wires
    u = np.eye(dim, dtype=np.complex128)
    for l in range(l_sel):
        rot = np.array([[1.0]], dtype=np.complex128)
        for m in range(n_wires):
            rot = np.kron(rot, _rot(w[l, m, 0], w[l, m, 1], w[l, m, 2]))
        u = rot @ u
        if n_wires > 1:
            r = (l % (n_wires - 1)) + 1
            for m in range(n_wires):
                u = _cz_diag(n_wires, m, (m + r) % n_wires)[:, None] * u
    return u


# ----------------------------------------------------------------------------
# Pallas kernel: linear_down -> N x (BatchNorm1d + quantum layer) -> linear_up
# ----------------------------------------------------------------------------
def qiddm_kernel(x_ref, wd_ref, bd_ref, bencp_ref, abiasp_ref, u_ref, usw_ref,
                 zexp2_ref, zw2_ref, bu_ref, out_ref,
                 *, n_iters, spectrum_layer, bn_eps, batch, hidden, d_dim):
    f32 = jnp.float32
    two_d = 2 * d_dim

    # linear_down:  (Bp, F) @ (F, H) + (1, H)
    xr = jnp.dot(x_ref[...], wd_ref[...], preferred_element_type=f32) + bd_ref[...]

    # mask of real (un-padded) batch rows for the BatchNorm statistics
    row_ids = jax.lax.broadcasted_iota(jnp.int32, xr.shape, 0)
    mask = (row_ids < batch).astype(f32)
    inv_b = 1.0 / batch

    for n in range(n_iters):
        # ---- BatchNorm1d (training mode: biased batch stats over real rows).
        #      One-pass form: the two cross-sublane reductions are independent
        #      and issue back-to-back through the XLU.
        #      gamma/beta are folded into bencp / abiasp (host precompute).
        xm = xr * mask
        mean = jnp.sum(xm, axis=0, keepdims=True) * inv_b
        ex2 = jnp.sum(xm * xr, axis=0, keepdims=True) * inv_b
        var = ex2 - mean * mean
        xn = (xr - mean) * jax.lax.rsqrt(var + bn_eps)

        # ---- RZ-encoding angles, built directly at width 2D as [ang | -ang]
        #      so cc = cos(angp) = [cos|cos] and ss = sin(angp) = [sin|-sin]
        #      need no in-kernel lane concat.  The K=H contraction is H
        #      broadcast FMAs on the VPU (no MXU pass / MRF bubble).
        angp = abiasp_ref[...] + xn[:, 0:1] * bencp_ref[0:1, :]
        for j in range(1, hidden):
            angp = angp + xn[:, j:j + 1] * bencp_ref[j:j + 1, :]
        cc = jnp.cos(angp)                         # (Bp, 2D) = [cos | cos]
        ss = jnp.sin(angp)                         # (Bp, 2D) = [sin | -sin]

        # ---- spectrum layer 0: psi0 = |0..0>, so only column 0 survives the
        #      diagonal => psi = cos0 * M[0,:] + sin0 * M[D,:]   (no matmul).
        base = n * spectrum_layer * two_d
        row_r = u_ref[base:base + 1, :]                       # (1, 2D)
        row_i = u_ref[base + d_dim:base + d_dim + 1, :]       # (1, 2D)
        psi = cc[:, 0:1] * row_r + ss[:, 0:1] * row_i         # (Bp, 2D)=[Re|Im]

        # ---- spectrum layers 1..L-1: diagonal RZ phase + complex matmul as
        #      TWO independent packed real matmuls (no slice/concat/roll of
        #      psi on the per-layer path):
        #         psi' = (psi*cc) @ M + (psi*ss) @ Msw
        for i in range(1, spectrum_layer):
            r0 = (n * spectrum_layer + i) * two_d
            rs = (n * (spectrum_layer - 1) + (i - 1)) * two_d
            psi = (jnp.dot(psi * cc, u_ref[r0:r0 + two_d, :],
                           preferred_element_type=f32)
                   + jnp.dot(psi * ss, usw_ref[rs:rs + two_d, :],
                             preferred_element_type=f32))

        # ---- |psi|^2 -> <Z_j>, folded straight into the readout matmul.
        psisq = psi * psi                                     # (Bp, 2D)
        if n + 1 < n_iters:
            xr = jnp.dot(psisq, zexp2_ref[...], preferred_element_type=f32)
        else:
            # last iteration: zexp folded into linear_up -> lane-dense F output
            out_ref[...] = (jnp.dot(psisq, zw2_ref[...],
                                    preferred_element_type=f32)
                            + bu_ref[...])


# ----------------------------------------------------------------------------
# Host-side parameter packing (fused operands for the kernel + raw for the ref)
# ----------------------------------------------------------------------------
def build_params(w_down, b_down, gamma, beta, weights1, w_up, b_up,
                 *, hidden_features, spectrum_layer, n_iters):
    h = hidden_features
    d = 2 ** h
    two_d = 2 * d
    f_dim = w_down.shape[1]

    # packed unitaries: per (n, i) block
    #   M   = [[Re(U^T),  Im(U^T)], [-Im(U^T), Re(U^T)]]
    #   Msw = [[-Im(U^T), Re(U^T)], [ Re(U^T), Im(U^T)]]   (row blocks swapped)
    w1 = np.asarray(weights1, dtype=np.float64)
    n_blk = n_iters * spectrum_layer
    n_blk_sw = n_iters * max(spectrum_layer - 1, 0)
    u_slab = np.zeros((n_blk * two_d, two_d), dtype=np.float32)
    usw_slab = np.zeros((max(n_blk_sw, 1) * two_d, two_d), dtype=np.float32)
    urt = np.zeros((n_iters, spectrum_layer, d, d), dtype=np.float32)
    uit = np.zeros((n_iters, spectrum_layer, d, d), dtype=np.float32)
    for n in range(n_iters):
        for i in range(spectrum_layer):
            u = strongly_entangling_unitary(w1[n, i])
            ut = u.T                                   # we compute psi_row @ U^T
            re = np.real(ut).astype(np.float32)
            im = np.imag(ut).astype(np.float32)
            urt[n, i], uit[n, i] = re, im
            idx = n * spectrum_layer + i
            u_slab[idx * two_d:(idx + 1) * two_d, :] = np.block([[re, im],
                                                                 [-im, re]])
            if i >= 1:
                isw = n * (spectrum_layer - 1) + (i - 1)
                usw_slab[isw * two_d:(isw + 1) * two_d, :] = np.block([[-im, re],
                                                                       [re, im]])

    # bit patterns (wire 0 = most significant bit, PennyLane convention)
    bits = np.zeros((h, d), dtype=np.float32)
    for j in range(h):
        for s in range(d):
            bits[j, s] = (s >> (h - 1 - j)) & 1
    benc = bits - 0.5                                  # (H, D): RZ phase coeffs
    zexp = (1.0 - 2.0 * bits).T                        # (D, H): PauliZ eigenvalues

    gamma_np = np.asarray(gamma, dtype=np.float32).reshape(h)
    beta_np = np.asarray(beta, dtype=np.float32).reshape(h)
    benc_s = (benc * gamma_np[:, None]).astype(np.float32)        # fold gamma
    abias = (beta_np[None, :] @ benc).astype(np.float32)          # fold beta (1, D)
    # width-2D duplicated-with-sign-flip versions -> angp = [ang | -ang]
    benc_p = np.concatenate([benc_s, -benc_s], axis=1).astype(np.float32)  # (H, 2D)
    abias_p = np.concatenate([abias, -abias], axis=1).astype(np.float32)   # (1, 2D)

    wd_t = np.asarray(w_down, dtype=np.float32).T      # (F, H)
    wu_t = np.asarray(w_up, dtype=np.float32).T        # (H, F)
    zw = (zexp @ wu_t).astype(np.float32)              # (D, F): zexp folded into linear_up
    zexp2 = np.vstack([zexp, zexp]).astype(np.float32)  # (2D, H): sums |Re|^2 + |Im|^2
    zw2 = np.vstack([zw, zw]).astype(np.float32)        # (2D, F)

    bd = np.asarray(b_down, np.float32).reshape(1, h)
    bu = np.asarray(b_up, np.float32).reshape(1, f_dim)

    kernel_params = {
        "wd_t": jnp.asarray(wd_t), "bd": jnp.asarray(bd),
        "benc_p": jnp.asarray(benc_p), "abias_p": jnp.asarray(abias_p),
        "u_slab": jnp.asarray(u_slab), "usw_slab": jnp.asarray(usw_slab),
        "zexp2": jnp.asarray(zexp2), "zw2": jnp.asarray(zw2),
        "bu": jnp.asarray(bu),
    }
    raw_params = {
        "wd_t": jnp.asarray(wd_t), "bd": jnp.asarray(bd),
        "gamma": jnp.asarray(gamma_np.reshape(1, h)),
        "beta": jnp.asarray(beta_np.reshape(1, h)),
        "benc": jnp.asarray(benc), "zexp": jnp.asarray(zexp),
        "urt": jnp.asarray(urt), "uit": jnp.asarray(uit),
        "wu_t": jnp.asarray(wu_t), "bu": jnp.asarray(bu),
    }
    return kernel_params, raw_params


# ----------------------------------------------------------------------------
# Wrapper
# ----------------------------------------------------------------------------
def qiddm_forward(x, kp, *, hidden_features, spectrum_layer, n_iters):
    assert n_iters >= 1
    b, c, w, h = x.shape
    f_dim = c * w * h
    d_dim = 2 ** hidden_features
    two_d = 2 * d_dim
    b_pad = ((b + 7) // 8) * 8                # full-sublane batch

    x_flat = x.reshape(b, f_dim).astype(jnp.float32)
    x_pad = jnp.pad(x_flat, ((0, b_pad - b), (0, 0)))   # single pad op

    operands = (x_pad, kp["wd_t"], kp["bd"], kp["benc_p"], kp["abias_p"],
                kp["u_slab"], kp["usw_slab"], kp["zexp2"], kp["zw2"], kp["bu"])

    kernel = functools.partial(qiddm_kernel, n_iters=n_iters,
                               spectrum_layer=spectrum_layer, bn_eps=1e-5,
                               batch=b, hidden=hidden_features, d_dim=d_dim)

    # Advisory cost estimate: tells XLA this custom call is tiny so it can be
    # overlapped with neighbouring ops in a larger model.
    flops = 2 * b_pad * f_dim * hidden_features                        # linear_down
    flops += n_iters * (2 * b_pad * hidden_features * two_d            # encoding FMAs
                        + (spectrum_layer - 1) * 2 * 2 * b_pad * two_d * two_d)
    flops += (n_iters - 1) * 2 * b_pad * two_d * hidden_features       # mid readouts
    flops += 2 * b_pad * two_d * f_dim                                 # final readout
    transcendentals = n_iters * b_pad * two_d * 2                      # cos + sin
    bytes_accessed = sum(int(np.prod(a.shape)) * 4 for a in operands) \
        + b_pad * f_dim * 4
    cost = pl.CostEstimate(flops=int(flops),
                           transcendentals=int(transcendentals),
                           bytes_accessed=int(bytes_accessed))

    # Single fused call, all operands resident in VMEM (<1 MiB): no grid at
    # this size (each grid step would be ~0.35 us of pure overhead).
    # TODO(synk): when the call site batches many rows per invocation (the real
    #   perf lever), add a grid over padded-batch tiles with
    #   dimension_semantics=("parallel",) so v7x shards across its 2 TCs (BN
    #   stats then need a prologue pass); and if HIDDEN grows (u_slab scales as
    #   N*L*(2D)^2) stream u_slab/usw_slab per (n, i) block in bf16 via a grid
    #   axis / manual DMA to stay under v7x's 64 MiB VMEM.
    out_pad = pl.pallas_call(
        kernel,
        out_shape=jax.ShapeDtypeStruct((b_pad, f_dim), jnp.float32),
        in_specs=[pl.BlockSpec(memory_space=pltpu.MemorySpace.VMEM)] * len(operands),
        out_specs=pl.BlockSpec(memory_space=pltpu.MemorySpace.VMEM),
        cost_estimate=cost,
    )(*operands)

    return out_pad[:b].reshape(b, c, w, h)


# ----------------------------------------------------------------------------
# Pure-JAX reference (raw, unfused math) for validation.
# ----------------------------------------------------------------------------
def qiddm_reference(x, rp, *, hidden_features, spectrum_layer, n_iters):
    b = x.shape[0]
    d = 2 ** hidden_features
    xr = x.reshape(b, -1).astype(jnp.float32) @ rp["wd_t"] + rp["bd"]
    for n in range(n_iters):
        mean = jnp.mean(xr, axis=0, keepdims=True)
        var = jnp.mean((xr - mean) ** 2, axis=0, keepdims=True)
        xr = (xr - mean) / jnp.sqrt(var + 1e-5) * rp["gamma"] + rp["beta"]
        ang = xr @ rp["benc"]
        ca, sa = jnp.cos(ang), jnp.sin(ang)
        pr = jnp.zeros((b, d), jnp.float32).at[:, 0].set(1.0)
        pi = jnp.zeros((b, d), jnp.float32)
        for i in range(spectrum_layer):
            pr2 = pr * ca - pi * sa
            pi2 = pr * sa + pi * ca
            urt, uit = rp["urt"][n, i], rp["uit"][n, i]
            pr = pr2 @ urt - pi2 @ uit
            pi = pr2 @ uit + pi2 @ urt
        xr = (pr * pr + pi * pi) @ rp["zexp"]
    out = xr @ rp["wu_t"] + rp["bu"]
    return out.reshape(x.shape)


# ----------------------------------------------------------------------------
# Main
# ----------------------------------------------------------------------------
if __name__ == "__main__":
    # module hyper-parameters (small, consistent with the forward pass)
    B, C, W, H_SP = 2, 4, 8, 8          # x: (2, 4, 8, 8)  -> input_dim = 256
    HIDDEN = 4                          # hidden_features == number of qubits
    L_SPEC = 2                          # spectrum_layer
    N_ITER = 2                          # N
    F_DIM = C * W * H_SP

    key = jax.random.PRNGKey(0)
    k_x, k_wd, k_bd, k_wu, k_bu, k_q = jax.random.split(key, 6)

    x = jax.random.normal(k_x, (B, C, W, H_SP), dtype=jnp.float32)

    # deterministic parameter init (synthetic; shapes match nn.Module.__init__)
    w_down = jax.random.normal(k_wd, (HIDDEN, F_DIM), dtype=jnp.float32) * 0.05
    b_down = jax.random.normal(k_bd, (HIDDEN,), dtype=jnp.float32) * 0.05
    w_up = jax.random.normal(k_wu, (F_DIM, HIDDEN), dtype=jnp.float32) * 0.1
    b_up = jax.random.normal(k_bu, (F_DIM,), dtype=jnp.float32) * 0.05
    gamma = jnp.ones((1, HIDDEN), dtype=jnp.float32)   # BatchNorm1d default init
    beta = jnp.zeros((1, HIDDEN), dtype=jnp.float32)
    weights1 = (jax.random.normal(k_q, (N_ITER, L_SPEC, 3, HIDDEN, 3),
                                  dtype=jnp.float32) * 0.4)

    kp, rp = build_params(np.asarray(w_down), np.asarray(b_down),
                          gamma, beta, weights1,
                          np.asarray(w_up), np.asarray(b_up),
                          hidden_features=HIDDEN, spectrum_layer=L_SPEC,
                          n_iters=N_ITER)

    out = qiddm_forward(x, kp, hidden_features=HIDDEN,
                        spectrum_layer=L_SPEC, n_iters=N_ITER)
    out = jax.block_until_ready(out)

    ref = qiddm_reference(x, rp, hidden_features=HIDDEN,
                          spectrum_layer=L_SPEC, n_iters=N_ITER)
    np.testing.assert_allclose(np.asarray(out), np.asarray(ref),
                               rtol=2e-2, atol=2e-2)
    assert out.shape == (B, C, W, H_SP)

    print("KERNEL_OK")
</pallas_src>

<mosaic_0001>
module attributes {stable_mosaic.version = 11 : i64} {
  func.func @qiddm_kernel(%arg0: memref<8x256xf32, #tpu.memory_space<vmem>>, %arg1: memref<256x4xf32, #tpu.memory_space<vmem>>, %arg2: memref<1x4xf32, #tpu.memory_space<vmem>>, %arg3: memref<4x32xf32, #tpu.memory_space<vmem>>, %arg4: memref<1x32xf32, #tpu.memory_space<vmem>>, %arg5: memref<128x32xf32, #tpu.memory_space<vmem>>, %arg6: memref<64x32xf32, #tpu.memory_space<vmem>>, %arg7: memref<32x4xf32, #tpu.memory_space<vmem>>, %arg8: memref<32x256xf32, #tpu.memory_space<vmem>>, %arg9: memref<1x256xf32, #tpu.memory_space<vmem>>, %arg10: memref<8x256xf32, #tpu.memory_space<vmem>>) attributes {dimension_semantics = [], scalar_prefetch = 0 : i64, scratch_operands = 0 : i64, tpu.core_type = #tpu.core_type<tc>} {
    %c0 = arith.constant 0 : index
    %c0_0 = arith.constant 0 : index
    %0 = vector.load %arg0[%c0, %c0_0] : memref<8x256xf32, #tpu.memory_space<vmem>>, vector<8x256xf32>
    %c0_1 = arith.constant 0 : index
    %c0_2 = arith.constant 0 : index
    %1 = vector.load %arg1[%c0_1, %c0_2] : memref<256x4xf32, #tpu.memory_space<vmem>>, vector<256x4xf32>
    %cst = arith.constant dense<0.000000e+00> : vector<8x4xf32>
    %2 = tpu.matmul %0, %1, %cst {dimension_numbers = #tpu.dot_dimension_numbers<[1], [0], [0], [1], [0, 0, 1, 1], [], []>} : vector<8x256xf32>, vector<256x4xf32>, vector<8x4xf32> -> vector<8x4xf32>
    %c0_3 = arith.constant 0 : index
    %c0_4 = arith.constant 0 : index
    %3 = vector.load %arg2[%c0_3, %c0_4] : memref<1x4xf32, #tpu.memory_space<vmem>>, vector<1x4xf32>
    %4 = vector.broadcast %3 : vector<1x4xf32> to vector<8x4xf32>
    %5 = arith.addf %2, %4 : vector<8x4xf32>
    %6 = tpu.iota {dimensions = array<i32: 0>} : vector<8x4xi32>
    %c2_i32 = arith.constant 2 : i32
    %7 = vector.broadcast %c2_i32 : i32 to vector<8x4xi32>
    %8 = arith.cmpi slt, %6, %7 : vector<8x4xi32>
    %9 = arith.extui %8 : vector<8x4xi1> to vector<8x4xi32>
    %10 = arith.sitofp %9 : vector<8x4xi32> to vector<8x4xf32>
    %11 = arith.mulf %5, %10 : vector<8x4xf32>
    %cst_5 = arith.constant dense<0.000000e+00> : vector<4xf32>
    %12 = vector.multi_reduction <add>, %11, %cst_5 [0] : vector<8x4xf32> to vector<4xf32>
    %13 = vector.shape_cast %12 : vector<4xf32> to vector<1x4xf32>
    %cst_6 = arith.constant 5.000000e-01 : f32
    %14 = vector.broadcast %cst_6 : f32 to vector<1x4xf32>
    %15 = arith.mulf %13, %14 : vector<1x4xf32>
    %16 = arith.mulf %11, %5 : vector<8x4xf32>
    %cst_7 = arith.constant dense<0.000000e+00> : vector<4xf32>
    %17 = vector.multi_reduction <add>, %16, %cst_7 [0] : vector<8x4xf32> to vector<4xf32>
    %18 = vector.shape_cast %17 : vector<4xf32> to vector<1x4xf32>
    %cst_8 = arith.constant 5.000000e-01 : f32
    %19 = vector.broadcast %cst_8 : f32 to vector<1x4xf32>
    %20 = arith.mulf %18, %19 : vector<1x4xf32>
    %21 = arith.mulf %15, %15 : vector<1x4xf32>
    %22 = arith.subf %20, %21 : vector<1x4xf32>
    %23 = vector.broadcast %15 : vector<1x4xf32> to vector<8x4xf32>
    %24 = arith.subf %5, %23 : vector<8x4xf32>
    %cst_9 = arith.constant 9.99999974E-6 : f32
    %25 = vector.broadcast %cst_9 : f32 to vector<1x4xf32>
    %26 = arith.addf %22, %25 : vector<1x4xf32>
    %27 = math.rsqrt %26 : vector<1x4xf32>
    %28 = vector.broadcast %27 : vector<1x4xf32> to vector<8x4xf32>
    %29 = arith.mulf %24, %28 : vector<8x4xf32>
    %c0_10 = arith.constant 0 : index
    %c0_11 = arith.constant 0 : index
    %30 = vector.load %arg4[%c0_10, %c0_11] : memref<1x32xf32, #tpu.memory_space<vmem>>, vector<1x32xf32>
    %31 = vector.extract_strided_slice %29 {offsets = [0, 0], sizes = [8, 1], strides = [1, 1]} : vector<8x4xf32> to vector<8x1xf32>
    %c0_12 = arith.constant 0 : index
    %c0_13 = arith.constant 0 : index
    %32 = vector.load %arg3[%c0_12, %c0_13] : memref<4x32xf32, #tpu.memory_space<vmem>>, vector<1x32xf32>
    %33 = vector.broadcast %31 : vector<8x1xf32> to vector<8x32xf32>
    %34 = vector.broadcast %32 : vector<1x32xf32> to vector<8x32xf32>
    %35 = arith.mulf %33, %34 : vector<8x32xf32>
    %36 = vector.broadcast %30 : vector<1x32xf32> to vector<8x32xf32>
    %37 = arith.addf %36, %35 : vector<8x32xf32>
    %38 = vector.extract_strided_slice %29 {offsets = [0, 1], sizes = [8, 1], strides = [1, 1]} : vector<8x4xf32> to vector<8x1xf32>
    %c1 = arith.constant 1 : index
    %c0_14 = arith.constant 0 : index
    %39 = vector.load %arg3[%c1, %c0_14] : memref<4x32xf32, #tpu.memory_space<vmem>>, vector<1x32xf32>
    %40 = vector.broadcast %38 : vector<8x1xf32> to vector<8x32xf32>
    %41 = vector.broadcast %39 : vector<1x32xf32> to vector<8x32xf32>
    %42 = arith.mulf %40, %41 : vector<8x32xf32>
    %43 = arith.addf %37, %42 : vector<8x32xf32>
    %44 = vector.extract_strided_slice %29 {offsets = [0, 2], sizes = [8, 1], strides = [1, 1]} : vector<8x4xf32> to vector<8x1xf32>
    %c2 = arith.constant 2 : index
    %c0_15 = arith.constant 0 : index
    %45 = vector.load %arg3[%c2, %c0_15] : memref<4x32xf32, #tpu.memory_space<vmem>>, vector<1x32xf32>
    %46 = vector.broadcast %44 : vector<8x1xf32> to vector<8x32xf32>
    %47 = vector.broadcast %45 : vector<1x32xf32> to vector<8x32xf32>
    %48 = arith.mulf %46, %47 : vector<8x32xf32>
    %49 = arith.addf %43, %48 : vector<8x32xf32>
    %50 = vector.extract_strided_slice %29 {offsets = [0, 3], sizes = [8, 1], strides = [1, 1]} : vector<8x4xf32> to vector<8x1xf32>
    %c3 = arith.constant 3 : index
    %c0_16 = arith.constant 0 : index
    %51 = vector.load %arg3[%c3, %c0_16] : memref<4x32xf32, #tpu.memory_space<vmem>>, vector<1x32xf32>
    %52 = vector.broadcast %50 : vector<8x1xf32> to vector<8x32xf32>
    %53 = vector.broadcast %51 : vector<1x32xf32> to vector<8x32xf32>
    %54 = arith.mulf %52, %53 : vector<8x32xf32>
    %55 = arith.addf %49, %54 : vector<8x32xf32>
    %56 = math.cos %55 : vector<8x32xf32>
    %57 = math.sin %55 : vector<8x32xf32>
    %c0_17 = arith.constant 0 : index
    %c0_18 = arith.constant 0 : index
    %58 = vector.load %arg5[%c0_17, %c0_18] : memref<128x32xf32, #tpu.memory_space<vmem>>, vector<1x32xf32>
    %c16 = arith.constant 16 : index
    %c0_19 = arith.constant 0 : index
    %59 = vector.load %arg5[%c16, %c0_19] : memref<128x32xf32, #tpu.memory_space<vmem>>, vector<1x32xf32>
    %60 = vector.extract_strided_slice %56 {offsets = [0, 0], sizes = [8, 1], strides = [1, 1]} : vector<8x32xf32> to vector<8x1xf32>
    %61 = vector.broadcast %60 : vector<8x1xf32> to vector<8x32xf32>
    %62 = vector.broadcast %58 : vector<1x32xf32> to vector<8x32xf32>
    %63 = arith.mulf %61, %62 : vector<8x32xf32>
    %64 = vector.extract_strided_slice %57 {offsets = [0, 0], sizes = [8, 1], strides = [1, 1]} : vector<8x32xf32> to vector<8x1xf32>
    %65 = vector.broadcast %64 : vector<8x1xf32> to vector<8x32xf32>
    %66 = vector.broadcast %59 : vector<1x32xf32> to vector<8x32xf32>
    %67 = arith.mulf %65, %66 : vector<8x32xf32>
    %68 = arith.addf %63, %67 : vector<8x32xf32>
    %69 = arith.mulf %68, %56 : vector<8x32xf32>
    %c32 = arith.constant 32 : index
    %c0_20 = arith.constant 0 : index
    %70 = vector.load %arg5[%c32, %c0_20] : memref<128x32xf32, #tpu.memory_space<vmem>>, vector<32x32xf32>
    %cst_21 = arith.constant dense<0.000000e+00> : vector<8x32xf32>
    %71 = tpu.matmul %69, %70, %cst_21 {dimension_numbers = #tpu.dot_dimension_numbers<[1], [0], [0], [1], [0, 0, 1, 1], [], []>} : vector<8x32xf32>, vector<32x32xf32>, vector<8x32xf32> -> vector<8x32xf32>
    %72 = arith.mulf %68, %57 : vector<8x32xf32>
    %c0_22 = arith.constant 0 : index
    %c0_23 = arith.constant 0 : index
    %73 = vector.load %arg6[%c0_22, %c0_23] : memref<64x32xf32, #tpu.memory_space<vmem>>, vector<32x32xf32>
    %cst_24 = arith.constant dense<0.000000e+00> : vector<8x32xf32>
    %74 = tpu.matmul %72, %73, %cst_24 {dimension_numbers = #tpu.dot_dimension_numbers<[1], [0], [0], [1], [0, 0, 1, 1], [], []>} : vector<8x32xf32>, vector<32x32xf32>, vector<8x32xf32> -> vector<8x32xf32>
    %75 = arith.addf %71, %74 : vector<8x32xf32>
    %76 = arith.mulf %75, %75 : vector<8x32xf32>
    %c0_25 = arith.constant 0 : index
    %c0_26 = arith.constant 0 : index
    %77 = vector.load %arg7[%c0_25, %c0_26] : memref<32x4xf32, #tpu.memory_space<vmem>>, vector<32x4xf32>
    %cst_27 = arith.constant dense<0.000000e+00> : vector<8x4xf32>
    %78 = tpu.matmul %76, %77, %cst_27 {dimension_numbers = #tpu.dot_dimension_numbers<[1], [0], [0], [1], [0, 0, 1, 1], [], []>} : vector<8x32xf32>, vector<32x4xf32>, vector<8x4xf32> -> vector<8x4xf32>
    %79 = arith.mulf %78, %10 : vector<8x4xf32>
    %cst_28 = arith.constant dense<0.000000e+00> : vector<4xf32>
    %80 = vector.multi_reduction <add>, %79, %cst_28 [0] : vector<8x4xf32> to vector<4xf32>
    %81 = vector.shape_cast %80 : vector<4xf32> to vector<1x4xf32>
    %cst_29 = arith.constant 5.000000e-01 : f32
    %82 = vector.broadcast %cst_29 : f32 to vector<1x4xf32>
    %83 = arith.mulf %81, %82 : vector<1x4xf32>
    %84 = arith.mulf %79, %78 : vector<8x4xf32>
    %cst_30 = arith.constant dense<0.000000e+00> : vector<4xf32>
    %85 = vector.multi_reduction <add>, %84, %cst_30 [0] : vector<8x4xf32> to vector<4xf32>
    %86 = vector.shape_cast %85 : vector<4xf32> to vector<1x4xf32>
    %cst_31 = arith.constant 5.000000e-01 : f32
    %87 = vector.broadcast %cst_31 : f32 to vector<1x4xf32>
    %88 = arith.mulf %86, %87 : vector<1x4xf32>
    %89 = arith.mulf %83, %83 : vector<1x4xf32>
    %90 = arith.subf %88, %89 : vector<1x4xf32>
    %91 = vector.broadcast %83 : vector<1x4xf32> to vector<8x4xf32>
    %92 = arith.subf %78, %91 : vector<8x4xf32>
    %cst_32 = arith.constant 9.99999974E-6 : f32
    %93 = vector.broadcast %cst_32 : f32 to vector<1x4xf32>
    %94 = arith.addf %90, %93 : vector<1x4xf32>
    %95 = math.rsqrt %94 : vector<1x4xf32>
    %96 = vector.broadcast %95 : vector<1x4xf32> to vector<8x4xf32>
    %97 = arith.mulf %92, %96 : vector<8x4xf32>
    %c0_33 = arith.constant 0 : index
    %c0_34 = arith.constant 0 : index
    %98 = vector.load %arg4[%c0_33, %c0_34] : memref<1x32xf32, #tpu.memory_space<vmem>>, vector<1x32xf32>
    %99 = vector.extract_strided_slice %97 {offsets = [0, 0], sizes = [8, 1], strides = [1, 1]} : vector<8x4xf32> to vector<8x1xf32>
    %c0_35 = arith.constant 0 : index
    %c0_36 = arith.constant 0 : index
    %100 = vector.load %arg3[%c0_35, %c0_36] : memref<4x32xf32, #tpu.memory_space<vmem>>, vector<1x32xf32>
    %101 = vector.broadcast %99 : vector<8x1xf32> to vector<8x32xf32>
    %102 = vector.broadcast %100 : vector<1x32xf32> to vector<8x32xf32>
    %103 = arith.mulf %101, %102 : vector<8x32xf32>
    %104 = vector.broadcast %98 : vector<1x32xf32> to vector<8x32xf32>
    %105 = arith.addf %104, %103 : vector<8x32xf32>
    %106 = vector.extract_strided_slice %97 {offsets = [0, 1], sizes = [8, 1], strides = [1, 1]} : vector<8x4xf32> to vector<8x1xf32>
    %c1_37 = arith.constant 1 : index
    %c0_38 = arith.constant 0 : index
    %107 = vector.load %arg3[%c1_37, %c0_38] : memref<4x32xf32, #tpu.memory_space<vmem>>, vector<1x32xf32>
    %108 = vector.broadcast %106 : vector<8x1xf32> to vector<8x32xf32>
    %109 = vector.broadcast %107 : vector<1x32xf32> to vector<8x32xf32>
    %110 = arith.mulf %108, %109 : vector<8x32xf32>
    %111 = arith.addf %105, %110 : vector<8x32xf32>
    %112 = vector.extract_strided_slice %97 {offsets = [0, 2], sizes = [8, 1], strides = [1, 1]} : vector<8x4xf32> to vector<8x1xf32>
    %c2_39 = arith.constant 2 : index
    %c0_40 = arith.constant 0 : index
    %113 = vector.load %arg3[%c2_39, %c0_40] : memref<4x32xf32, #tpu.memory_space<vmem>>, vector<1x32xf32>
    %114 = vector.broadcast %112 : vector<8x1xf32> to vector<8x32xf32>
    %115 = vector.broadcast %113 : vector<1x32xf32> to vector<8x32xf32>
    %116 = arith.mulf %114, %115 : vector<8x32xf32>
    %117 = arith.addf %111, %116 : vector<8x32xf32>
    %118 = vector.extract_strided_slice %97 {offsets = [0, 3], sizes = [8, 1], strides = [1, 1]} : vector<8x4xf32> to vector<8x1xf32>
    %c3_41 = arith.constant 3 : index
    %c0_42 = arith.constant 0 : index
    %119 = vector.load %arg3[%c3_41, %c0_42] : memref<4x32xf32, #tpu.memory_space<vmem>>, vector<1x32xf32>
    %120 = vector.broadcast %118 : vector<8x1xf32> to vector<8x32xf32>
    %121 = vector.broadcast %119 : vector<1x32xf32> to vector<8x32xf32>
    %122 = arith.mulf %120, %121 : vector<8x32xf32>
    %123 = arith.addf %117, %122 : vector<8x32xf32>
    %124 = math.cos %123 : vector<8x32xf32>
    %125 = math.sin %123 : vector<8x32xf32>
    %c64 = arith.constant 64 : index
    %c0_43 = arith.constant 0 : index
    %126 = vector.load %arg5[%c64, %c0_43] : memref<128x32xf32, #tpu.memory_space<vmem>>, vector<1x32xf32>
    %c80 = arith.constant 80 : index
    %c0_44 = arith.constant 0 : index
    %127 = vector.load %arg5[%c80, %c0_44] : memref<128x32xf32, #tpu.memory_space<vmem>>, vector<1x32xf32>
    %128 = vector.extract_strided_slice %124 {offsets = [0, 0], sizes = [8, 1], strides = [1, 1]} : vector<8x32xf32> to vector<8x1xf32>
    %129 = vector.broadcast %128 : vector<8x1xf32> to vector<8x32xf32>
    %130 = vector.broadcast %126 : vector<1x32xf32> to vector<8x32xf32>
    %131 = arith.mulf %129, %130 : vector<8x32xf32>
    %132 = vector.extract_strided_slice %125 {offsets = [0, 0], sizes = [8, 1], strides = [1, 1]} : vector<8x32xf32> to vector<8x1xf32>
    %133 = vector.broadcast %132 : vector<8x1xf32> to vector<8x32xf32>
    %134 = vector.broadcast %127 : vector<1x32xf32> to vector<8x32xf32>
    %135 = arith.mulf %133, %134 : vector<8x32xf32>
    %136 = arith.addf %131, %135 : vector<8x32xf32>
    %137 = arith.mulf %136, %124 : vector<8x32xf32>
    %c96 = arith.constant 96 : index
    %c0_45 = arith.constant 0 : index
    %138 = vector.load %arg5[%c96, %c0_45] : memref<128x32xf32, #tpu.memory_space<vmem>>, vector<32x32xf32>
    %cst_46 = arith.constant dense<0.000000e+00> : vector<8x32xf32>
    %139 = tpu.matmul %137, %138, %cst_46 {dimension_numbers = #tpu.dot_dimension_numbers<[1], [0], [0], [1], [0, 0, 1, 1], [], []>} : vector<8x32xf32>, vector<32x32xf32>, vector<8x32xf32> -> vector<8x32xf32>
    %140 = arith.mulf %136, %125 : vector<8x32xf32>
    %c32_47 = arith.constant 32 : index
    %c0_48 = arith.constant 0 : index
    %141 = vector.load %arg6[%c32_47, %c0_48] : memref<64x32xf32, #tpu.memory_space<vmem>>, vector<32x32xf32>
    %cst_49 = arith.constant dense<0.000000e+00> : vector<8x32xf32>
    %142 = tpu.matmul %140, %141, %cst_49 {dimension_numbers = #tpu.dot_dimension_numbers<[1], [0], [0], [1], [0, 0, 1, 1], [], []>} : vector<8x32xf32>, vector<32x32xf32>, vector<8x32xf32> -> vector<8x32xf32>
    %143 = arith.addf %139, %142 : vector<8x32xf32>
    %144 = arith.mulf %143, %143 : vector<8x32xf32>
    %c0_50 = arith.constant 0 : index
    %c0_51 = arith.constant 0 : index
    %145 = vector.load %arg8[%c0_50, %c0_51] : memref<32x256xf32, #tpu.memory_space<vmem>>, vector<32x256xf32>
    %cst_52 = arith.constant dense<0.000000e+00> : vector<8x256xf32>
    %146 = tpu.matmul %144, %145, %cst_52 {dimension_numbers = #tpu.dot_dimension_numbers<[1], [0], [0], [1], [0, 0, 1, 1], [], []>} : vector<8x32xf32>, vector<32x256xf32>, vector<8x256xf32> -> vector<8x256xf32>
    %c0_53 = arith.constant 0 : index
    %c0_54 = arith.constant 0 : index
    %147 = vector.load %arg9[%c0_53, %c0_54] : memref<1x256xf32, #tpu.memory_space<vmem>>, vector<1x256xf32>
    %148 = vector.broadcast %147 : vector<1x256xf32> to vector<8x256xf32>
    %149 = arith.addf %146, %148 : vector<8x256xf32>
    %c0_55 = arith.constant 0 : index
    %c0_56 = arith.constant 0 : index
    %150 = vector.load %arg10[%c0_55, %c0_56] : memref<8x256xf32, #tpu.memory_space<vmem>>, vector<8x256xf32>
    tpu.vector_store %arg10[%c0_55, %c0_56], %149 {strides = array<i32>} : memref<8x256xf32, #tpu.memory_space<vmem>>, vector<8x256xf32>,
    return
  }
}

</mosaic_0001>

<llo_original>
// kernel: tpu_custom_call.1
$region0: #{tpu_custom_call.1}
  #allocation0 [shape = 'u32[]', space=smem, size = 0x4, offset = 0x4, fixed_abs, tag = 'smem constant byte address 0x4 - core index']
  #allocation1 [shape = 'u32[144,128]{1,0:T(1,128)}', space=vmem, size = 0x12000, scoped, tag = 'internal scratch']
  %s0 = inlined_call_operand.vmem [shape: f32[8,256], index: 0, kind: input, shape index: {}]
  %s1 = inlined_call_operand.vmem [shape: f32[256,4], index: 1, kind: input, shape index: {}]
  %s2 = inlined_call_operand.vmem [shape: f32[1,4], index: 2, kind: input, shape index: {}]
  %s3 = inlined_call_operand.vmem [shape: f32[4,32], index: 3, kind: input, shape index: {}]
  %s4 = inlined_call_operand.vmem [shape: f32[1,32], index: 4, kind: input, shape index: {}]
  %s5 = inlined_call_operand.vmem [shape: f32[128,32], index: 5, kind: input, shape index: {}]
  %s6 = inlined_call_operand.vmem [shape: f32[64,32], index: 6, kind: input, shape index: {}]
  %s7 = inlined_call_operand.vmem [shape: f32[32,4], index: 7, kind: input, shape index: {}]
  %s8 = inlined_call_operand.vmem [shape: f32[32,256], index: 8, kind: input, shape index: {}]
  %s9 = inlined_call_operand.vmem [shape: f32[1,256], index: 9, kind: input, shape index: {}]
  %s10 = inlined_call_operand.hbm [shape: f32[8,256], index: 10, kind: output, shape index: {}]
  %s11 = sld [smem:[#allocation0]]
  $region50: #{tpu_custom_call.1} parent=0
    _
  %s13 = ssub.s32 1, %s11
  %s14 = scalar_select 0, %s13, %s11
  $region1: #{tpu_custom_call.1} parent=0
    #allocation2 [shape = 'u8[8192]{0}', space=vmem, size = 0x2000, scoped, tag = 'output window, operand 0, single buffered']
    #allocation3 [shape = 's32[1]{0}', space=sflag, size = 0x4, scoped, tag = 'scoped memory for tpu_custom_call.1']
    %15 = vsyncpa [#allocation3], 0
    // Predicated region
    $region2: #{tpu_custom_call.1} parent=1 // pred_check
      _
    $region3: #{tpu_custom_call.1} parent=1 // pred_check_branch
      %17 = sbr.rel (0) target = $region5
    $region4: #{tpu_custom_call.1} parent=1 // pred_region
      _
    $region5: #{tpu_custom_call.1} parent=1 // pred_fallthru
      _
    // Predicated region
    $region6: #{tpu_custom_call.1} parent=1 // pred_check
      _
    $region7: #{tpu_custom_call.1} parent=1 // pred_check_branch
      %19 = sbr.rel (0) target = $region9
    $region8: #{tpu_custom_call.1} parent=1 // pred_region
      _
    $region9: #{tpu_custom_call.1} parent=1 // pred_fallthru
      _
    // Predicated region
    $region10: #{tpu_custom_call.1} parent=1 // pred_check
      _
    $region11: #{tpu_custom_call.1} parent=1 // pred_check_branch
      %21 = sbr.rel (0) target = $region13
    $region12: #{tpu_custom_call.1} parent=1 // pred_region
      _
    $region13: #{tpu_custom_call.1} parent=1 // pred_fallthru
      _
    // Predicated region
    $region14: #{tpu_custom_call.1} parent=1 // pred_check
      _
    $region15: #{tpu_custom_call.1} parent=1 // pred_check_branch
      %23 = sbr.rel (0) target = $region17
    $region16: #{tpu_custom_call.1} parent=1 // pred_region
      _
    $region17: #{tpu_custom_call.1} parent=1 // pred_fallthru
      _
    // Predicated region
    $region18: #{tpu_custom_call.1} parent=1 // pred_check
      _
    $region19: #{tpu_custom_call.1} parent=1 // pred_check_branch
      %25 = sbr.rel (0) target = $region21
    $region20: #{tpu_custom_call.1} parent=1 // pred_region
      _
    $region21: #{tpu_custom_call.1} parent=1 // pred_fallthru
      _
    // Predicated region
    $region22: #{tpu_custom_call.1} parent=1 // pred_check
      _
    $region23: #{tpu_custom_call.1} parent=1 // pred_check_branch
      %27 = sbr.rel (0) target = $region25
    $region24: #{tpu_custom_call.1} parent=1 // pred_region
      _
    $region25: #{tpu_custom_call.1} parent=1 // pred_fallthru
      _
    // Predicated region
    $region26: #{tpu_custom_call.1} parent=1 // pred_check
      _
    $region27: #{tpu_custom_call.1} parent=1 // pred_check_branch
      %29 = sbr.rel (0) target = $region29
    $region28: #{tpu_custom_call.1} parent=1 // pred_region
      _
    $region29: #{tpu_custom_call.1} parent=1 // pred_fallthru
      _
    // Predicated region
    $region30: #{tpu_custom_call.1} parent=1 // pred_check
      _
    $region31: #{tpu_custom_call.1} parent=1 // pred_check_branch
      %31 = sbr.rel (0) target = $region33
    $region32: #{tpu_custom_call.1} parent=1 // pred_region
      _
    $region33: #{tpu_custom_call.1} parent=1 // pred_fallthru
      _
    // Predicated region
    $region34: #{tpu_custom_call.1} parent=1 // pred_check
      _
    $region35: #{tpu_custom_call.1} parent=1 // pred_check_branch
      %33 = sbr.rel (0) target = $region37
    $region36: #{tpu_custom_call.1} parent=1 // pred_region
      _
    $region37: #{tpu_custom_call.1} parent=1 // pred_fallthru
      _
    // Predicated region
    $region38: #{tpu_custom_call.1} parent=1 // pred_check
      _
    $region39: #{tpu_custom_call.1} parent=1 // pred_check_branch
      %35 = sbr.rel (0) target = $region41
    $region40: #{tpu_custom_call.1} parent=1 // pred_region
      _
    $region41: #{tpu_custom_call.1} parent=1 // pred_fallthru
      _
    %v36 = vld [vmem:[%s0] sm:$0xff]
    %v37 = vld [vmem:[%s0 + $0x8] sm:$0xff]
    %v38 = vld [vmem:[%s1] sm:$0xff]
    %v39 = vld [vmem:[%s1 + $0x8] sm:$0xff]
    %v40 = vld [vmem:[%s1 + $0x10] sm:$0xff]
    %v41 = vld [vmem:[%s1 + $0x18] sm:$0xff]
    %v42 = vld [vmem:[%s1 + $0x20] sm:$0xff]
    %v43 = vld [vmem:[%s1 + $0x28] sm:$0xff]
    %v44 = vld [vmem:[%s1 + $0x30] sm:$0xff]
    %v45 = vld [vmem:[%s1 + $0x38] sm:$0xff]
    %v46 = vld [vmem:[%s1 + $0x40] sm:$0xff]
    %v47 = vld [vmem:[%s1 + $0x48] sm:$0xff]
    %v48 = vld [vmem:[%s1 + $0x50] sm:$0xff]
    %v49 = vld [vmem:[%s1 + $0x58] sm:$0xff]
    %v50 = vld [vmem:[%s1 + $0x60] sm:$0xff]
    %v51 = vld [vmem:[%s1 + $0x68] sm:$0xff]
    %v52 = vld [vmem:[%s1 + $0x70] sm:$0xff]
    %v53 = vld [vmem:[%s1 + $0x78] sm:$0xff]
    %v54 = vld [vmem:[%s1 + $0x80] sm:$0xff]
    %v55 = vld [vmem:[%s1 + $0x88] sm:$0xff]
    %v56 = vld [vmem:[%s1 + $0x90] sm:$0xff]
    %v57 = vld [vmem:[%s1 + $0x98] sm:$0xff]
    %v58 = vld [vmem:[%s1 + $0xa0] sm:$0xff]
    %v59 = vld [vmem:[%s1 + $0xa8] sm:$0xff]
    %v60 = vld [vmem:[%s1 + $0xb0] sm:$0xff]
    %v61 = vld [vmem:[%s1 + $0xb8] sm:$0xff]
    %v62 = vld [vmem:[%s1 + $0xc0] sm:$0xff]
    %v63 = vld [vmem:[%s1 + $0xc8] sm:$0xff]
    %v64 = vld [vmem:[%s1 + $0xd0] sm:$0xff]
    %v65 = vld [vmem:[%s1 + $0xd8] sm:$0xff]
    %v66 = vld [vmem:[%s1 + $0xe0] sm:$0xff]
    %v67 = vld [vmem:[%s1 + $0xe8] sm:$0xff]
    %v68 = vld [vmem:[%s1 + $0xf0] sm:$0xff]
    %v69 = vld [vmem:[%s1 + $0xf8] sm:$0xff]
    %v70 = vld [vmem:[%s2] sm:$0x1]
    %v72 = vlaneseq
    %v73 = vshrl.u32 %v72, 7
    %v74 = vsub.s32 0, %v73
    %v75 = vrot.slane %v70, %v74
    %77 = vmatprep.subr.mxu0 0.0
    %78 = vmatpush1.msra.mxu0 %v38
    %79 = vmatprep.subr.mxu0 0.0
    %80 = vmatpush1.msra.mxu0 %v39
    %81 = vmatprep.subr.mxu0 0.0
    %82 = vmatpush1.msra.mxu0 %v40
    %83 = vmatprep.subr.mxu0 0.0
    %84 = vmatpush1.msra.mxu0 %v41
    %85 = vmatprep.subr.mxu0 0.0
    %86 = vmatpush1.msra.mxu0 %v42
    %87 = vmatprep.subr.mxu0 0.0
    %88 = vmatpush1.msra.mxu0 %v43
    %89 = vmatprep.subr.mxu0 0.0
    %90 = vmatpush1.msra.mxu0 %v44
    %91 = vmatprep.subr.mxu0 0.0
    %92 = vmatpush1.msra.mxu0 %v45
    %93 = vmatprep.subr.mxu0 0.0
    %94 = vmatpush1.msra.mxu0 %v46
    %95 = vmatprep.subr.mxu0 0.0
    %96 = vmatpush1.msra.mxu0 %v47
    %97 = vmatprep.subr.mxu0 0.0
    %98 = vmatpush1.msra.mxu0 %v48
    %99 = vmatprep.subr.mxu0 0.0
    %100 = vmatpush1.msra.mxu0 %v49
    %101 = vmatprep.subr.mxu0 0.0
    %102 = vmatpush1.msra.mxu0 %v50
    %103 = vmatprep.subr.mxu0 0.0
    %104 = vmatpush1.msra.mxu0 %v51
    %105 = vmatprep.subr.mxu0 0.0
    %106 = vmatpush1.msra.mxu0 %v52
    %107 = vmatprep.subr.mxu0 0.0
    %108 = vmatpush1.msra.mxu0 %v53
    %109 = vmatprep.subr.mxu0 0.0
    %110 = vmatpush1.msra.mxu0 %v54
    %111 = vmatprep.subr.mxu0 0.0
    %112 = vmatpush1.msra.mxu0 %v55
    %113 = vmatprep.subr.mxu0 0.0
    %114 = vmatpush1.msra.mxu0 %v56
    %115 = vmatprep.subr.mxu0 0.0
    %116 = vmatpush1.msra.mxu0 %v57
    %117 = vmatprep.subr.mxu0 0.0
    %118 = vmatpush1.msra.mxu0 %v58
    %119 = vmatprep.subr.mxu0 0.0
    %120 = vmatpush1.msra.mxu0 %v59
    %121 = vmatprep.subr.mxu0 0.0
    %122 = vmatpush1.msra.mxu0 %v60
    %123 = vmatprep.subr.mxu0 0.0
    %124 = vmatpush1.msra.mxu0 %v61
    %125 = vmatprep.subr.mxu0 0.0
    %126 = vmatpush1.msra.mxu0 %v62
    %127 = vmatprep.subr.mxu0 0.0
    %128 = vmatpush1.msra.mxu0 %v63
    %129 = vmatprep.subr.mxu0 0.0
    %130 = vmatpush1.msra.mxu0 %v64
    %131 = vmatprep.subr.mxu0 0.0
    %132 = vmatpush1.msra.mxu0 %v65
    %133 = vmatprep.subr.mxu0 0.0
    %134 = vmatpush1.msra.mxu0 %v66
    %135 = vmatprep.subr.mxu0 0.0
    %136 = vmatpush1.msra.mxu0 %v67
    %137 = vmatprep.subr.mxu0 0.0
    %138 = vmatpush1.msra.mxu0 %v68
    %139 = vmatprep.subr.mxu0 0.0
    %140 = vmatpush1.msra.mxu0 %v69
    %141 = vmatprep.mubr.f32.mxu0 %v37
    %142 = vmatmul.mubr.f32.gmra.mrb[0].mxu0 %v36
    %v143 = vpop.f32.mrb[0].mxu0
    %v144 = vadd.f32 %v75, %v143
    %v145 = vpop.f32.mrb[0].mxu0
    %146 = vdwg.mxu0
    %v147 = vlaneseq
    %v148 = vshrl.u32 %v147, 7
    %vm149 = vcmp.lt.s32.totalorder %v148, 2
    %v150 = vsel %vm149, 1, 0
    %v151 = vcvt.s32.f32 %v150
    %v152 = vmul.f32 %v144, %v151
    %vm153 = vcmask 31744
    %v154 = vsel %vm153, %v152, 0.0
    %v155 = vrot.slane %v154, 4
    %v156 = vadd.f32 %v154, %v155
    %v157 = vrot.slane %v156, 2
    %v158 = vadd.f32 %v156, %v157
    %v159 = vrot.slane %v158, 1
    %v160 = vadd.f32 %v158, %v159
    %v161 = vmul.f32 %v160, 0.5
    %v162 = vmul.f32 %v152, %v144
    %v163 = vsel %vm153, %v162, 0.0
    %v164 = vrot.slane %v163, 4
    %v165 = vadd.f32 %v163, %v164
    %v166 = vrot.slane %v165, 2
    %v167 = vadd.f32 %v165, %v166
    %v168 = vrot.slane %v167, 1
    %v169 = vadd.f32 %v167, %v168
    %v170 = vmul.f32 %v169, 0.5
    %v171 = vmul.f32 %v161, %v161
    %v172 = vsub.f32 %v170, %v171
    %v173 = vsub.f32 %v144, %v161
    %v174 = vadd.f32 %v172, 1e-05
    %v175 = vrsqrt.pop %v174
    %v176 = vmul.f32 %v173, %v175
    %v177 = vld [vmem:[%s4] sm:$0x1]
    %v178 = vld [vmem:[%s3] sm:$0x1]
    %180 = vset.pattern.permute.xlu0 0
    %181 = vperm.xlu0 %180, %v176
    %v182 = vpop.permute.xlu0 %181
    %v184 = vlaneseq
    %v185 = vshrl.u32 %v184, 7
    %v186 = vsub.s32 0, %v185
    %v187 = vrot.slane %v178, %v186
    %v188 = vmul.f32 %v182, %v187
    %v190 = vlaneseq
    %v191 = vshrl.u32 %v190, 7
    %v192 = vsub.s32 0, %v191
    %v193 = vrot.slane %v177, %v192
    %v195 = vadd.f32 %v193, %v188
    %v196 = vld [vmem:[%s3 + $0x1] sm:$0x1]
    %197 = vset.pattern.permute.xlu0 1
    %198 = vperm.xlu0 %197, %v176
    %v199 = vpop.permute.xlu0 %198
    %v201 = vlaneseq
    %v202 = vshrl.u32 %v201, 7
    %v203 = vsub.s32 0, %v202
    %v204 = vrot.slane %v196, %v203
    %v205 = vmul.f32 %v199, %v204
    %v206 = vadd.f32 %v195, %v205
    %v207 = vld [vmem:[%s3 + $0x2] sm:$0x1]
    %208 = vset.pattern.permute.xlu0 2
    %209 = vperm.xlu0 %208, %v176
    %v210 = vpop.permute.xlu0 %209
    %v212 = vlaneseq
    %v213 = vshrl.u32 %v212, 7
    %v214 = vsub.s32 0, %v213
    %v215 = vrot.slane %v207, %v214
    %v216 = vmul.f32 %v210, %v215
    %v217 = vadd.f32 %v206, %v216
    %v218 = vld [vmem:[%s3 + $0x3] sm:$0x1]
    %219 = vset.pattern.permute.xlu0 3
    %220 = vperm.xlu0 %219, %v176
    %v221 = vpop.permute.xlu0 %220
    %v223 = vlaneseq
    %v224 = vshrl.u32 %v223, 7
    %v225 = vsub.s32 0, %v224
    %v226 = vrot.slane %v218, %v225
    %v227 = vmul.f32 %v221, %v226
    %v228 = vadd.f32 %v217, %v227
    %v229 = vand.u32 2147483647, %v228
    %vm230 = vcmp.le.f32.partialorder %v229, 0.7853982
    %vm231 = vcmp.lt.s32.totalorder %v228, 0
    %v232 = vand.u32 %v228, 2139095040
    %v233 = vshrl.u32 %v232, 23
    %v234 = vsub.s32 %v233, 127
    %v235 = vand.u32 2147483647, %v228
    %v236 = vand.u32 %v235, 8388607
    %v237 = vor.u32 %v236, 8388608
    %v238 = vsub.s32 0, %v237
    %v239 = vadd.s32 %v234, 1
    %vm240 = vcmp.gt.s32.totalorder %v239, 0
    %v241 = vsel %vm240, %v239, 0
    %v242 = vshrl.u32 %v241, 5
    %v243 = vand.u32 %v241, 31
    %v244 = vsub.s32 32, %v243
    %v245 = vshrl.u32 683565275, %v244
    %v246 = vshll.u32 683565275, %v243
    %v247 = vshrl.u32 2475754826, %v244
    %v248 = vor.u32 %v246, %v247
    %v249 = vshll.u32 2475754826, %v243
    %v250 = vshrl.u32 2131351028, %v244
    %v251 = vor.u32 %v249, %v250
    %v252 = vshll.u32 2131351028, %v243
    %v253 = vshrl.u32 2102212464, %v244
    %v254 = vor.u32 %v252, %v253
    %v255 = vshll.u32 2102212464, %v243
    %v256 = vshrl.u32 920167782, %v244
    %v257 = vor.u32 %v255, %v256
    %v258 = vshll.u32 920167782, %v243
    %v259 = vshrl.u32 1326507024, %v244
    %v260 = vor.u32 %v258, %v259
    %vm261 = vcmp.lt.s32.totalorder %v242, 1
    %vm262 = vcmp.lt.s32.totalorder %v242, 2
    %vm263 = vcmp.lt.s32.totalorder %v242, 3
    %vm264 = vcmp.lt.s32.totalorder %v242, 4
    %v265 = vsel %vm261, %v245, %v248
    %v266 = vsel %vm264, %v254, 2102212464
    %v267 = vsel %vm263, %v251, %v266
    %v268 = vsel %vm262, %v265, %v267
    %v269 = vsel %vm261, %v248, %v251
    %v270 = vsel %vm264, %v257, 920167782
    %v271 = vsel %vm263, %v254, %v270
    %v272 = vsel %vm262, %v269, %v271
    %v273 = vsel %vm261, %v251, %v254
    %v274 = vsel %vm264, %v260, 1326507024
    %v275 = vsel %vm263, %v257, %v274
    %v276 = vsel %vm262, %v273, %v275
    %v277 = vshll.u32 %v237, 8
    %v278 = vmul.u32.u64.compose %v277, %v276
    %v279 = vextract.low.u32 %v278
    %v280 = vextract.high.u32 %v278
    %v281 = vmul.u32.u64.compose %v277, %v272
    %v282 = vextract.low.u32 %v281
    %v283 = vextract.high.u32 %v281
    %v284 = vmul.u32 %v277, %v268
    %v285 = vadd.s32 %v280, %v282
    %vm286 = vc.u32 %v280, %v282
    %v287 = vadd.s32 %v283, 1
    %v288 = vsel %vm286, %v287, %v283
    %v289 = vadd.s32 %v284, %v288
    %v290 = vadd.s32 %v289, 536870912
    %v291 = vshrl.u32 %v290, 30
    %v292 = vshll.u32 %v291, 30
    %v293 = vsub.s32 %v289, %v292
    %vm294 = vcmp.lt.s32.totalorder %v293, 0
    %v295 = vsub.s32 0, %v293
    %v296 = vsel %vm294, %v295, %v293
    %v297 = vclz %v296
    %v298 = vsub.s32 %v297, 2
    %vm299 = vcmp.gt.s32.totalorder 0, %v298
    %v300 = vsel %vm299, 0, %v298
    %v301 = vsub.s32 32, %v300
    %v302 = vshll.u32 %v293, %v300
    %v303 = vshrl.u32 %v285, %v301
    %v304 = vor.u32 %v302, %v303
    %v305 = vsub.s32 4294967266, %v300
    %v306 = vadd.s32 %v305, 127
    %v307 = vshll.u32 %v306, 23
    %v308 = vor.u32 4788187, %v307
    %v309 = vand.u32 2147483647, %v308
    %v311 = vcvt.s32.f32 %v304
    %v312 = vmul.f32 %v311, %v309
    %v313 = vxor.u32 %v312, 2147483648
    %v314 = vsel %vm231, %v313, %v312
    %v315 = vsub.s32 4, %v291
    %v316 = vsel %vm231, %v315, %v291
    %v317 = vsel %vm230, %v228, %v314
    %v318 = vsel %vm230, 0, %v316
    %v319 = vcosq.f32.pop %v317
    %v320 = vsinq.f32.pop %v317
    %vm321 = vweird.f32 %v228
    %v322 = vand.u32 %v318, 3
    %vm323 = vcmp.lt.s32.totalorder %v322, 2
    %vm324 = vcmp.eq.s32.totalorder %v322, 0
    %v325 = vxor.u32 %v320, 2147483648
    %v326 = vsel %vm324, %v319, %v325
    %vm327 = vcmp.eq.s32.totalorder %v322, 2
    %v328 = vxor.u32 %v319, 2147483648
    %v329 = vsel %vm327, %v328, %v320
    %v330 = vsel %vm323, %v326, %v329
    %v331 = vsel %vm321, nan, %v330
    %v332 = vand.u32 2147483647, %v228
    %vm333 = vcmp.le.f32.partialorder %v332, 0.7853982
    %vm334 = vcmp.lt.s32.totalorder %v228, 0
    %v335 = vand.u32 %v228, 2139095040
    %v336 = vshrl.u32 %v335, 23
    %v337 = vsub.s32 %v336, 127
    %v338 = vand.u32 2147483647, %v228
    %v339 = vand.u32 %v338, 8388607
    %v340 = vor.u32 %v339, 8388608
    %v341 = vsub.s32 0, %v340
    %v342 = vadd.s32 %v337, 1
    %vm343 = vcmp.gt.s32.totalorder %v342, 0
    %v344 = vsel %vm343, %v342, 0
    %v345 = vshrl.u32 %v344, 5
    %v346 = vand.u32 %v344, 31
    %v347 = vsub.s32 32, %v346
    %v348 = vshrl.u32 683565275, %v347
    %v349 = vshll.u32 683565275, %v346
    %v350 = vshrl.u32 2475754826, %v347
    %v351 = vor.u32 %v349, %v350
    %v352 = vshll.u32 2475754826, %v346
    %v353 = vshrl.u32 2131351028, %v347
    %v354 = vor.u32 %v352, %v353
    %v355 = vshll.u32 2131351028, %v346
    %v356 = vshrl.u32 2102212464, %v347
    %v357 = vor.u32 %v355, %v356
    %v358 = vshll.u32 2102212464, %v346
    %v359 = vshrl.u32 920167782, %v347
    %v360 = vor.u32 %v358, %v359
    %v361 = vshll.u32 920167782, %v346
    %v362 = vshrl.u32 1326507024, %v347
    %v363 = vor.u32 %v361, %v362
    %vm364 = vcmp.lt.s32.totalorder %v345, 1
    %vm365 = vcmp.lt.s32.totalorder %v345, 2
    %vm366 = vcmp.lt.s32.totalorder %v345, 3
    %vm367 = vcmp.lt.s32.totalorder %v345, 4
    %v368 = vsel %vm364, %v348, %v351
    %v369 = vsel %vm367, %v357, 2102212464
    %v370 = vsel %vm366, %v354, %v369
    %v371 = vsel %vm365, %v368, %v370
    %v372 = vsel %vm364, %v351, %v354
    %v373 = vsel %vm367, %v360, 920167782
    %v374 = vsel %vm366, %v357, %v373
    %v375 = vsel %vm365, %v372, %v374
    %v376 = vsel %vm364, %v354, %v357
    %v377 = vsel %vm367, %v363, 1326507024
    %v378 = vsel %vm366, %v360, %v377
    %v379 = vsel %vm365, %v376, %v378
    %v380 = vshll.u32 %v340, 8
    %v381 = vmul.u32.u64.compose %v380, %v379
    %v382 = vextract.low.u32 %v381
    %v383 = vextract.high.u32 %v381
    %v384 = vmul.u32.u64.compose %v380, %v375
    %v385 = vextract.low.u32 %v384
    %v386 = vextract.high.u32 %v384
    %v387 = vmul.u32 %v380, %v371
    %v388 = vadd.s32 %v383, %v385
    %vm389 = vc.u32 %v383, %v385
    %v390 = vadd.s32 %v386, 1
    %v391 = vsel %vm389, %v390, %v386
    %v392 = vadd.s32 %v387, %v391
    %v393 = vadd.s32 %v392, 536870912
    %v394 = vshrl.u32 %v393, 30
    %v395 = vshll.u32 %v394, 30
    %v396 = vsub.s32 %v392, %v395
    %vm397 = vcmp.lt.s32.totalorder %v396, 0
    %v398 = vsub.s32 0, %v396
    %v399 = vsel %vm397, %v398, %v396
    %v400 = vclz %v399
    %v401 = vsub.s32 %v400, 2
    %vm402 = vcmp.gt.s32.totalorder 0, %v401
    %v403 = vsel %vm402, 0, %v401
    %v404 = vsub.s32 32, %v403
    %v405 = vshll.u32 %v396, %v403
    %v406 = vshrl.u32 %v388, %v404
    %v407 = vor.u32 %v405, %v406
    %v408 = vsub.s32 4294967266, %v403
    %v409 = vadd.s32 %v408, 127
    %v410 = vshll.u32 %v409, 23
    %v411 = vor.u32 4788187, %v410
    %v412 = vand.u32 2147483647, %v411
    %v414 = vcvt.s32.f32 %v407
    %v415 = vmul.f32 %v414, %v412
    %v416 = vxor.u32 %v415, 2147483648
    %v417 = vsel %vm334, %v416, %v415
    %v418 = vsub.s32 4, %v394
    %v419 = vsel %vm334, %v418, %v394
    %v420 = vsel %vm333, %v228, %v417
    %v421 = vsel %vm333, 0, %v419
    %v422 = vcosq.f32.pop %v420
    %v423 = vsinq.f32.pop %v420
    %vm424 = vweird.f32 %v228
    %v425 = vadd.s32 %v421, 3
    %v426 = vand.u32 %v425, 3
    %vm427 = vcmp.lt.s32.totalorder %v426, 2
    %vm428 = vcmp.eq.s32.totalorder %v426, 0
    %v429 = vxor.u32 %v423, 2147483648
    %v430 = vsel %vm428, %v422, %v429
    %vm431 = vcmp.eq.s32.totalorder %v426, 2
    %v432 = vxor.u32 %v422, 2147483648
    %v433 = vsel %vm431, %v432, %v423
    %v434 = vsel %vm427, %v430, %v433
    %v435 = vsel %vm424, nan, %v434
    %v436 = vld [vmem:[%s5] sm:$0x1]
    %v437 = vld [vmem:[%s5 + $0x10] sm:$0x1]
    %439 = vset.pattern.permute.xlu0 0
    %440 = vperm.xlu0 %439, %v331
    %v441 = vpop.permute.xlu0 %440
    %v443 = vlaneseq
    %v444 = vshrl.u32 %v443, 7
    %v445 = vsub.s32 0, %v444
    %v446 = vrot.slane %v436, %v445
    %v447 = vmul.f32 %v441, %v446
    %449 = vset.pattern.permute.xlu0 0
    %450 = vperm.xlu0 %449, %v435
    %v451 = vpop.permute.xlu0 %450
    %v453 = vlaneseq
    %v454 = vshrl.u32 %v453, 7
    %v455 = vsub.s32 0, %v454
    %v456 = vrot.slane %v437, %v455
    %v457 = vmul.f32 %v451, %v456
    %v458 = vadd.f32 %v447, %v457
    %v459 = vmul.f32 %v458, %v331
    %v460 = vld [vmem:[%s5 + $0x20] sm:$0xff]
    %v461 = vld [vmem:[%s5 + $0x28] sm:$0xff]
    %v462 = vld [vmem:[%s5 + $0x30] sm:$0xff]
    %v463 = vld [vmem:[%s5 + $0x38] sm:$0xff]
    %v464 = vmul.f32 %v458, %v435
    %v465 = vld [vmem:[%s6] sm:$0xff]
    %v466 = vld [vmem:[%s6 + $0x8] sm:$0xff]
    %v467 = vld [vmem:[%s6 + $0x10] sm:$0xff]
    %v468 = vld [vmem:[%s6 + $0x18] sm:$0xff]
    %vm469 = vcmask 261120
    %v471 = vsel %vm469, %v464, 0
    %473 = vmatprep.subr.mxu0 0.0
    %474 = vmatpush1.msra.mxu0 %v465
    %475 = vmatprep.subr.mxu0 0.0
    %476 = vmatpush1.msra.mxu0 %v466
    %477 = vmatprep.subr.mxu0 0.0
    %478 = vmatpush1.msra.mxu0 %v467
    %479 = vmatprep.subr.mxu0 0.0
    %480 = vmatpush1.msra.mxu0 %v468
    %481 = vmatprep.subr.mxu0 0.0
    %482 = vmatpush1.msra.mxu0 0.0
    %483 = vmatprep.subr.mxu0 0.0
    %484 = vmatpush1.msra.mxu0 0.0
    %485 = vmatprep.subr.mxu0 0.0
    %486 = vmatpush1.msra.mxu0 0.0
    %487 = vmatprep.subr.mxu0 0.0
    %488 = vmatpush1.msra.mxu0 0.0
    %489 = vmatprep.subr.mxu0 0.0
    %490 = vmatpush1.msra.mxu0 0.0
    %491 = vmatprep.subr.mxu0 0.0
    %492 = vmatpush1.msra.mxu0 0.0
    %493 = vmatprep.subr.mxu0 0.0
    %494 = vmatpush1.msra.mxu0 0.0
    %495 = vmatprep.subr.mxu0 0.0
    %496 = vmatpush1.msra.mxu0 0.0
    %497 = vmatprep.subr.mxu0 0.0
    %498 = vmatpush1.msra.mxu0 0.0
    %499 = vmatprep.subr.mxu0 0.0
    %500 = vmatpush1.msra.mxu0 0.0
    %501 = vmatprep.subr.mxu0 0.0
    %502 = vmatpush1.msra.mxu0 0.0
    %503 = vmatprep.subr.mxu0 0.0
    %504 = vmatpush1.msra.mxu0 0.0
    %505 = vmatprep.subr.mxu0 0.0
    %506 = vmatpush1.msra.mxu0 0.0
    %507 = vmatprep.subr.mxu0 0.0
    %508 = vmatpush1.msra.mxu0 0.0
    %509 = vmatprep.subr.mxu0 0.0
    %510 = vmatpush1.msra.mxu0 0.0
    %511 = vmatprep.subr.mxu0 0.0
    %512 = vmatpush1.msra.mxu0 0.0
    %513 = vmatprep.subr.mxu0 0.0
    %514 = vmatpush1.msra.mxu0 0.0
    %515 = vmatprep.subr.mxu0 0.0
    %516 = vmatpush1.msra.mxu0 0.0
    %517 = vmatprep.subr.mxu0 0.0
    %518 = vmatpush1.msra.mxu0 0.0
    %519 = vmatprep.subr.mxu0 0.0
    %520 = vmatpush1.msra.mxu0 0.0
    %521 = vmatprep.subr.mxu0 0.0
    %522 = vmatpush1.msra.mxu0 0.0
    %523 = vmatprep.subr.mxu0 0.0
    %524 = vmatpush1.msra.mxu0 0.0
    %525 = vmatprep.subr.mxu0 0.0
    %526 = vmatpush1.msra.mxu0 0.0
    %527 = vmatprep.subr.mxu0 0.0
    %528 = vmatpush1.msra.mxu0 0.0
    %529 = vmatprep.subr.mxu0 0.0
    %530 = vmatpush1.msra.mxu0 0.0
    %531 = vmatprep.subr.mxu0 0.0
    %532 = vmatpush1.msra.mxu0 0.0
    %533 = vmatprep.subr.mxu0 0.0
    %534 = vmatpush1.msra.mxu0 0.0
    %535 = vmatprep.subr.mxu0 0.0
    %536 = vmatpush1.msra.mxu0 0.0
    %537 = vmatprep.mubr.f32.mxu0 0.0
    %538 = vmatmul.mubr.f32.gmra.mrb[0].mxu0 %v471
    %v539 = vpop.f32.mrb[0].mxu0
    %v540 = vadd.f32 0.0, %v539
    %v541 = vpop.f32.mrb[0].mxu0
    %542 = vdwg.mxu0
    %v544 = vsel %vm469, %v459, 0
    %546 = vmatprep.subr.mxu0 0.0
    %547 = vmatpush1.msra.mxu0 %v460
    %548 = vmatprep.subr.mxu0 0.0
    %549 = vmatpush1.msra.mxu0 %v461
    %550 = vmatprep.subr.mxu0 0.0
    %551 = vmatpush1.msra.mxu0 %v462
    %552 = vmatprep.subr.mxu0 0.0
    %553 = vmatpush1.msra.mxu0 %v463
    %554 = vmatprep.subr.mxu0 0.0
    %555 = vmatpush1.msra.mxu0 0.0
    %556 = vmatprep.subr.mxu0 0.0
    %557 = vmatpush1.msra.mxu0 0.0
    %558 = vmatprep.subr.mxu0 0.0
    %559 = vmatpush1.msra.mxu0 0.0
    %560 = vmatprep.subr.mxu0 0.0
    %561 = vmatpush1.msra.mxu0 0.0
    %562 = vmatprep.subr.mxu0 0.0
    %563 = vmatpush1.msra.mxu0 0.0
    %564 = vmatprep.subr.mxu0 0.0
    %565 = vmatpush1.msra.mxu0 0.0
    %566 = vmatprep.subr.mxu0 0.0
    %567 = vmatpush1.msra.mxu0 0.0
    %568 = vmatprep.subr.mxu0 0.0
    %569 = vmatpush1.msra.mxu0 0.0
    %570 = vmatprep.subr.mxu0 0.0
    %571 = vmatpush1.msra.mxu0 0.0
    %572 = vmatprep.subr.mxu0 0.0
    %573 = vmatpush1.msra.mxu0 0.0
    %574 = vmatprep.subr.mxu0 0.0
    %575 = vmatpush1.msra.mxu0 0.0
    %576 = vmatprep.subr.mxu0 0.0
    %577 = vmatpush1.msra.mxu0 0.0
    %578 = vmatprep.subr.mxu0 0.0
    %579 = vmatpush1.msra.mxu0 0.0
    %580 = vmatprep.subr.mxu0 0.0
    %581 = vmatpush1.msra.mxu0 0.0
    %582 = vmatprep.subr.mxu0 0.0
    %583 = vmatpush1.msra.mxu0 0.0
    %584 = vmatprep.subr.mxu0 0.0
    %585 = vmatpush1.msra.mxu0 0.0
    %586 = vmatprep.subr.mxu0 0.0
    %587 = vmatpush1.msra.mxu0 0.0
    %588 = vmatprep.subr.mxu0 0.0
    %589 = vmatpush1.msra.mxu0 0.0
    %590 = vmatprep.subr.mxu0 0.0
    %591 = vmatpush1.msra.mxu0 0.0
    %592 = vmatprep.subr.mxu0 0.0
    %593 = vmatpush1.msra.mxu0 0.0
    %594 = vmatprep.subr.mxu0 0.0
    %595 = vmatpush1.msra.mxu0 0.0
    %596 = vmatprep.subr.mxu0 0.0
    %597 = vmatpush1.msra.mxu0 0.0
    %598 = vmatprep.subr.mxu0 0.0
    %599 = vmatpush1.msra.mxu0 0.0
    %600 = vmatprep.subr.mxu0 0.0
    %601 = vmatpush1.msra.mxu0 0.0
    %602 = vmatprep.subr.mxu0 0.0
    %603 = vmatpush1.msra.mxu0 0.0
    %604 = vmatprep.subr.mxu0 0.0
    %605 = vmatpush1.msra.mxu0 0.0
    %606 = vmatprep.subr.mxu0 0.0
    %607 = vmatpush1.msra.mxu0 0.0
    %608 = vmatprep.subr.mxu0 0.0
    %609 = vmatpush1.msra.mxu0 0.0
    %610 = vmatprep.mubr.f32.mxu0 0.0
    %611 = vmatmul.mubr.f32.gmra.mrb[0].mxu0 %v544
    %v612 = vpop.f32.mrb[0].mxu0
    %v613 = vadd.f32 %v540, %v612
    %v614 = vpop.f32.mrb[0].mxu0
    %615 = vdwg.mxu0
    %v616 = vmul.f32 %v613, %v613
    %v617 = vld [vmem:[%s7] sm:$0xff]
    %v618 = vld [vmem:[%s7 + $0x8] sm:$0xff]
    %v619 = vld [vmem:[%s7 + $0x10] sm:$0xff]
    %v620 = vld [vmem:[%s7 + $0x18] sm:$0xff]
    %v622 = vsel %vm469, %v616, 0
    %624 = vmatprep.subr.mxu0 0.0
    %625 = vmatpush1.msra.mxu0 %v617
    %626 = vmatprep.subr.mxu0 0.0
    %627 = vmatpush1.msra.mxu0 %v618
    %628 = vmatprep.subr.mxu0 0.0
    %629 = vmatpush1.msra.mxu0 %v619
    %630 = vmatprep.subr.mxu0 0.0
    %631 = vmatpush1.msra.mxu0 %v620
    %632 = vmatprep.subr.mxu0 0.0
    %633 = vmatpush1.msra.mxu0 0.0
    %634 = vmatprep.subr.mxu0 0.0
    %635 = vmatpush1.msra.mxu0 0.0
    %636 = vmatprep.subr.mxu0 0.0
    %637 = vmatpush1.msra.mxu0 0.0
    %638 = vmatprep.subr.mxu0 0.0
    %639 = vmatpush1.msra.mxu0 0.0
    %640 = vmatprep.subr.mxu0 0.0
    %641 = vmatpush1.msra.mxu0 0.0
    %642 = vmatprep.subr.mxu0 0.0
    %643 = vmatpush1.msra.mxu0 0.0
    %644 = vmatprep.subr.mxu0 0.0
    %645 = vmatpush1.msra.mxu0 0.0
    %646 = vmatprep.subr.mxu0 0.0
    %647 = vmatpush1.msra.mxu0 0.0
    %648 = vmatprep.subr.mxu0 0.0
    %649 = vmatpush1.msra.mxu0 0.0
    %650 = vmatprep.subr.mxu0 0.0
    %651 = vmatpush1.msra.mxu0 0.0
    %652 = vmatprep.subr.mxu0 0.0
    %653 = vmatpush1.msra.mxu0 0.0
    %654 = vmatprep.subr.mxu0 0.0
    %655 = vmatpush1.msra.mxu0 0.0
    %656 = vmatprep.subr.mxu0 0.0
    %657 = vmatpush1.msra.mxu0 0.0
    %658 = vmatprep.subr.mxu0 0.0
    %659 = vmatpush1.msra.mxu0 0.0
    %660 = vmatprep.subr.mxu0 0.0
    %661 = vmatpush1.msra.mxu0 0.0
    %662 = vmatprep.subr.mxu0 0.0
    %663 = vmatpush1.msra.mxu0 0.0
    %664 = vmatprep.subr.mxu0 0.0
    %665 = vmatpush1.msra.mxu0 0.0
    %666 = vmatprep.subr.mxu0 0.0
    %667 = vmatpush1.msra.mxu0 0.0
    %668 = vmatprep.subr.mxu0 0.0
    %669 = vmatpush1.msra.mxu0 0.0
    %670 = vmatprep.subr.mxu0 0.0
    %671 = vmatpush1.msra.mxu0 0.0
    %672 = vmatprep.subr.mxu0 0.0
    %673 = vmatpush1.msra.mxu0 0.0
    %674 = vmatprep.subr.mxu0 0.0
    %675 = vmatpush1.msra.mxu0 0.0
    %676 = vmatprep.subr.mxu0 0.0
    %677 = vmatpush1.msra.mxu0 0.0
    %678 = vmatprep.subr.mxu0 0.0
    %679 = vmatpush1.msra.mxu0 0.0
    %680 = vmatprep.subr.mxu0 0.0
    %681 = vmatpush1.msra.mxu0 0.0
    %682 = vmatprep.subr.mxu0 0.0
    %683 = vmatpush1.msra.mxu0 0.0
    %684 = vmatprep.subr.mxu0 0.0
    %685 = vmatpush1.msra.mxu0 0.0
    %686 = vmatprep.subr.mxu0 0.0
    %687 = vmatpush1.msra.mxu0 0.0
    %688 = vmatprep.mubr.f32.mxu0 0.0
    %689 = vmatmul.mubr.f32.gmra.mrb[0].mxu0 %v622
    %v690 = vpop.f32.mrb[0].mxu0
    %v691 = vadd.f32 0.0, %v690
    %v692 = vpop.f32.mrb[0].mxu0
    %693 = vdwg.mxu0
    %v694 = vmul.f32 %v691, %v151
    %v695 = vsel %vm153, %v694, 0.0
    %v696 = vrot.slane %v695, 4
    %v697 = vadd.f32 %v695, %v696
    %v698 = vrot.slane %v697, 2
    %v699 = vadd.f32 %v697, %v698
    %v700 = vrot.slane %v699, 1
    %v701 = vadd.f32 %v699, %v700
    %v702 = vmul.f32 %v701, 0.5
    %v703 = vmul.f32 %v694, %v691
    %v704 = vsel %vm153, %v703, 0.0
    %v705 = vrot.slane %v704, 4
    %v706 = vadd.f32 %v704, %v705
    %v707 = vrot.slane %v706, 2
    %v708 = vadd.f32 %v706, %v707
    %v709 = vrot.slane %v708, 1
    %v710 = vadd.f32 %v708, %v709
    %v711 = vmul.f32 %v710, 0.5
    %v712 = vmul.f32 %v702, %v702
    %v713 = vsub.f32 %v711, %v712
    %v714 = vsub.f32 %v691, %v702
    %v715 = vadd.f32 %v713, 1e-05
    %v716 = vrsqrt.pop %v715
    %v717 = vmul.f32 %v714, %v716
    %719 = vset.pattern.permute.xlu0 0
    %720 = vperm.xlu0 %719, %v717
    %v721 = vpop.permute.xlu0 %720
    %v723 = vmul.f32 %v721, %v187
    %v724 = vadd.f32 %v193, %v723
    %725 = vset.pattern.permute.xlu0 1
    %726 = vperm.xlu0 %725, %v717
    %v727 = vpop.permute.xlu0 %726
    %v729 = vmul.f32 %v727, %v204
    %v730 = vadd.f32 %v724, %v729
    %731 = vset.pattern.permute.xlu0 2
    %732 = vperm.xlu0 %731, %v717
    %v733 = vpop.permute.xlu0 %732
    %v735 = vmul.f32 %v733, %v215
    %v736 = vadd.f32 %v730, %v735
    %737 = vset.pattern.permute.xlu0 3
    %738 = vperm.xlu0 %737, %v717
    %v739 = vpop.permute.xlu0 %738
    %v741 = vmul.f32 %v739, %v226
    %v742 = vadd.f32 %v736, %v741
    %v743 = vand.u32 2147483647, %v742
    %vm744 = vcmp.le.f32.partialorder %v743, 0.7853982
    %vm745 = vcmp.lt.s32.totalorder %v742, 0
    %v746 = vand.u32 %v742, 2139095040
    %v747 = vshrl.u32 %v746, 23
    %v748 = vsub.s32 %v747, 127
    %v749 = vand.u32 2147483647, %v742
    %v750 = vand.u32 %v749, 8388607
    %v751 = vor.u32 %v750, 8388608
    %v752 = vsub.s32 0, %v751
    %v753 = vadd.s32 %v748, 1
    %vm754 = vcmp.gt.s32.totalorder %v753, 0
    %v755 = vsel %vm754, %v753, 0
    %v756 = vshrl.u32 %v755, 5
    %v757 = vand.u32 %v755, 31
    %v758 = vsub.s32 32, %v757
    %v759 = vshrl.u32 683565275, %v758
    %v760 = vshll.u32 683565275, %v757
    %v761 = vshrl.u32 2475754826, %v758
    %v762 = vor.u32 %v760, %v761
    %v763 = vshll.u32 2475754826, %v757
    %v764 = vshrl.u32 2131351028, %v758
    %v765 = vor.u32 %v763, %v764
    %v766 = vshll.u32 2131351028, %v757
    %v767 = vshrl.u32 2102212464, %v758
    %v768 = vor.u32 %v766, %v767
    %v769 = vshll.u32 2102212464, %v757
    %v770 = vshrl.u32 920167782, %v758
    %v771 = vor.u32 %v769, %v770
    %v772 = vshll.u32 920167782, %v757
    %v773 = vshrl.u32 1326507024, %v758
    %v774 = vor.u32 %v772, %v773
    %vm775 = vcmp.lt.s32.totalorder %v756, 1
    %vm776 = vcmp.lt.s32.totalorder %v756, 2
    %vm777 = vcmp.lt.s32.totalorder %v756, 3
    %vm778 = vcmp.lt.s32.totalorder %v756, 4
    %v779 = vsel %vm775, %v759, %v762
    %v780 = vsel %vm778, %v768, 2102212464
    %v781 = vsel %vm777, %v765, %v780
    %v782 = vsel %vm776, %v779, %v781
    %v783 = vsel %vm775, %v762, %v765
    %v784 = vsel %vm778, %v771, 920167782
    %v785 = vsel %vm777, %v768, %v784
    %v786 = vsel %vm776, %v783, %v785
    %v787 = vsel %vm775, %v765, %v768
    %v788 = vsel %vm778, %v774, 1326507024
    %v789 = vsel %vm777, %v771, %v788
    %v790 = vsel %vm776, %v787, %v789
    %v791 = vshll.u32 %v751, 8
    %v792 = vmul.u32.u64.compose %v791, %v790
    %v793 = vextract.low.u32 %v792
    %v794 = vextract.high.u32 %v792
    %v795 = vmul.u32.u64.compose %v791, %v786
    %v796 = vextract.low.u32 %v795
    %v797 = vextract.high.u32 %v795
    %v798 = vmul.u32 %v791, %v782
    %v799 = vadd.s32 %v794, %v796
    %vm800 = vc.u32 %v794, %v796
    %v801 = vadd.s32 %v797, 1
    %v802 = vsel %vm800, %v801, %v797
    %v803 = vadd.s32 %v798, %v802
    %v804 = vadd.s32 %v803, 536870912
    %v805 = vshrl.u32 %v804, 30
    %v806 = vshll.u32 %v805, 30
    %v807 = vsub.s32 %v803, %v806
    %vm808 = vcmp.lt.s32.totalorder %v807, 0
    %v809 = vsub.s32 0, %v807
    %v810 = vsel %vm808, %v809, %v807
    %v811 = vclz %v810
    %v812 = vsub.s32 %v811, 2
    %vm813 = vcmp.gt.s32.totalorder 0, %v812
    %v814 = vsel %vm813, 0, %v812
    %v815 = vsub.s32 32, %v814
    %v816 = vshll.u32 %v807, %v814
    %v817 = vshrl.u32 %v799, %v815
    %v818 = vor.u32 %v816, %v817
    %v819 = vsub.s32 4294967266, %v814
    %v820 = vadd.s32 %v819, 127
    %v821 = vshll.u32 %v820, 23
    %v822 = vor.u32 4788187, %v821
    %v823 = vand.u32 2147483647, %v822
    %v825 = vcvt.s32.f32 %v818
    %v826 = vmul.f32 %v825, %v823
    %v827 = vxor.u32 %v826, 2147483648
    %v828 = vsel %vm745, %v827, %v826
    %v829 = vsub.s32 4, %v805
    %v830 = vsel %vm745, %v829, %v805
    %v831 = vsel %vm744, %v742, %v828
    %v832 = vsel %vm744, 0, %v830
    %v833 = vcosq.f32.pop %v831
    %v834 = vsinq.f32.pop %v831
    %vm835 = vweird.f32 %v742
    %v836 = vand.u32 %v832, 3
    %vm837 = vcmp.lt.s32.totalorder %v836, 2
    %vm838 = vcmp.eq.s32.totalorder %v836, 0
    %v839 = vxor.u32 %v834, 2147483648
    %v840 = vsel %vm838, %v833, %v839
    %vm841 = vcmp.eq.s32.totalorder %v836, 2
    %v842 = vxor.u32 %v833, 2147483648
    %v843 = vsel %vm841, %v842, %v834
    %v844 = vsel %vm837, %v840, %v843
    %v845 = vsel %vm835, nan, %v844
    %v846 = vand.u32 2147483647, %v742
    %vm847 = vcmp.le.f32.partialorder %v846, 0.7853982
    %vm848 = vcmp.lt.s32.totalorder %v742, 0
    %v849 = vand.u32 %v742, 2139095040
    %v850 = vshrl.u32 %v849, 23
    %v851 = vsub.s32 %v850, 127
    %v852 = vand.u32 2147483647, %v742
    %v853 = vand.u32 %v852, 8388607
    %v854 = vor.u32 %v853, 8388608
    %v855 = vsub.s32 0, %v854
    %v856 = vadd.s32 %v851, 1
    %vm857 = vcmp.gt.s32.totalorder %v856, 0
    %v858 = vsel %vm857, %v856, 0
    %v859 = vshrl.u32 %v858, 5
    %v860 = vand.u32 %v858, 31
    %v861 = vsub.s32 32, %v860
    %v862 = vshrl.u32 683565275, %v861
    %v863 = vshll.u32 683565275, %v860
    %v864 = vshrl.u32 2475754826, %v861
    %v865 = vor.u32 %v863, %v864
    %v866 = vshll.u32 2475754826, %v860
    %v867 = vshrl.u32 2131351028, %v861
    %v868 = vor.u32 %v866, %v867
    %v869 = vshll.u32 2131351028, %v860
    %v870 = vshrl.u32 2102212464, %v861
    %v871 = vor.u32 %v869, %v870
    %v872 = vshll.u32 2102212464, %v860
    %v873 = vshrl.u32 920167782, %v861
    %v874 = vor.u32 %v872, %v873
    %v875 = vshll.u32 920167782, %v860
    %v876 = vshrl.u32 1326507024, %v861
    %v877 = vor.u32 %v875, %v876
    %vm878 = vcmp.lt.s32.totalorder %v859, 1
    %vm879 = vcmp.lt.s32.totalorder %v859, 2
    %vm880 = vcmp.lt.s32.totalorder %v859, 3
    %vm881 = vcmp.lt.s32.totalorder %v859, 4
    %v882 = vsel %vm878, %v862, %v865
    %v883 = vsel %vm881, %v871, 2102212464
    %v884 = vsel %vm880, %v868, %v883
    %v885 = vsel %vm879, %v882, %v884
    %v886 = vsel %vm878, %v865, %v868
    %v887 = vsel %vm881, %v874, 920167782
    %v888 = vsel %vm880, %v871, %v887
    %v889 = vsel %vm879, %v886, %v888
    %v890 = vsel %vm878, %v868, %v871
    %v891 = vsel %vm881, %v877, 1326507024
    %v892 = vsel %vm880, %v874, %v891
    %v893 = vsel %vm879, %v890, %v892
    %v894 = vshll.u32 %v854, 8
    %v895 = vmul.u32.u64.compose %v894, %v893
    %v896 = vextract.low.u32 %v895
    %v897 = vextract.high.u32 %v895
    %v898 = vmul.u32.u64.compose %v894, %v889
    %v899 = vextract.low.u32 %v898
    %v900 = vextract.high.u32 %v898
    %v901 = vmul.u32 %v894, %v885
    %v902 = vadd.s32 %v897, %v899
    %vm903 = vc.u32 %v897, %v899
    %v904 = vadd.s32 %v900, 1
    %v905 = vsel %vm903, %v904, %v900
    %v906 = vadd.s32 %v901, %v905
    %v907 = vadd.s32 %v906, 536870912
    %v908 = vshrl.u32 %v907, 30
    %v909 = vshll.u32 %v908, 30
    %v910 = vsub.s32 %v906, %v909
    %vm911 = vcmp.lt.s32.totalorder %v910, 0
    %v912 = vsub.s32 0, %v910
    %v913 = vsel %vm911, %v912, %v910
    %v914 = vclz %v913
    %v915 = vsub.s32 %v914, 2
    %vm916 = vcmp.gt.s32.totalorder 0, %v915
    %v917 = vsel %vm916, 0, %v915
    %v918 = vsub.s32 32, %v917
    %v919 = vshll.u32 %v910, %v917
    %v920 = vshrl.u32 %v902, %v918
    %v921 = vor.u32 %v919, %v920
    %v922 = vsub.s32 4294967266, %v917
    %v923 = vadd.s32 %v922, 127
    %v924 = vshll.u32 %v923, 23
    %v925 = vor.u32 4788187, %v924
    %v926 = vand.u32 2147483647, %v925
    %v928 = vcvt.s32.f32 %v921
    %v929 = vmul.f32 %v928, %v926
    %v930 = vxor.u32 %v929, 2147483648
    %v931 = vsel %vm848, %v930, %v929
    %v932 = vsub.s32 4, %v908
    %v933 = vsel %vm848, %v932, %v908
    %v934 = vsel %vm847, %v742, %v931
    %v935 = vsel %vm847, 0, %v933
    %v936 = vcosq.f32.pop %v934
    %v937 = vsinq.f32.pop %v934
    %vm938 = vweird.f32 %v742
    %v939 = vadd.s32 %v935, 3
    %v940 = vand.u32 %v939, 3
    %vm941 = vcmp.lt.s32.totalorder %v940, 2
    %vm942 = vcmp.eq.s32.totalorder %v940, 0
    %v943 = vxor.u32 %v937, 2147483648
    %v944 = vsel %vm942, %v936, %v943
    %vm945 = vcmp.eq.s32.totalorder %v940, 2
    %v946 = vxor.u32 %v936, 2147483648
    %v947 = vsel %vm945, %v946, %v937
    %v948 = vsel %vm941, %v944, %v947
    %v949 = vsel %vm938, nan, %v948
    %v950 = vld [vmem:[%s5 + $0x40] sm:$0x1]
    %v951 = vld [vmem:[%s5 + $0x50] sm:$0x1]
    %953 = vset.pattern.permute.xlu0 0
    %954 = vperm.xlu0 %953, %v845
    %v955 = vpop.permute.xlu0 %954
    %v957 = vlaneseq
    %v958 = vshrl.u32 %v957, 7
    %v959 = vsub.s32 0, %v958
    %v960 = vrot.slane %v950, %v959
    %v961 = vmul.f32 %v955, %v960
    %963 = vset.pattern.permute.xlu0 0
    %964 = vperm.xlu0 %963, %v949
    %v965 = vpop.permute.xlu0 %964
    %v967 = vlaneseq
    %v968 = vshrl.u32 %v967, 7
    %v969 = vsub.s32 0, %v968
    %v970 = vrot.slane %v951, %v969
    %v971 = vmul.f32 %v965, %v970
    %v972 = vadd.f32 %v961, %v971
    %v973 = vmul.f32 %v972, %v845
    %v974 = vld [vmem:[%s5 + $0x60] sm:$0xff]
    %v975 = vld [vmem:[%s5 + $0x68] sm:$0xff]
    %v976 = vld [vmem:[%s5 + $0x70] sm:$0xff]
    %v977 = vld [vmem:[%s5 + $0x78] sm:$0xff]
    %v978 = vmul.f32 %v972, %v949
    %v979 = vld [vmem:[%s6 + $0x20] sm:$0xff]
    %v980 = vld [vmem:[%s6 + $0x28] sm:$0xff]
    %v981 = vld [vmem:[%s6 + $0x30] sm:$0xff]
    %v982 = vld [vmem:[%s6 + $0x38] sm:$0xff]
    %v984 = vsel %vm469, %v978, 0
    %986 = vmatprep.subr.mxu0 0.0
    %987 = vmatpush1.msra.mxu0 %v979
    %988 = vmatprep.subr.mxu0 0.0
    %989 = vmatpush1.msra.mxu0 %v980
    %990 = vmatprep.subr.mxu0 0.0
    %991 = vmatpush1.msra.mxu0 %v981
    %992 = vmatprep.subr.mxu0 0.0
    %993 = vmatpush1.msra.mxu0 %v982
    %994 = vmatprep.subr.mxu0 0.0
    %995 = vmatpush1.msra.mxu0 0.0
    %996 = vmatprep.subr.mxu0 0.0
    %997 = vmatpush1.msra.mxu0 0.0
    %998 = vmatprep.subr.mxu0 0.0
    %999 = vmatpush1.msra.mxu0 0.0
    %1000 = vmatprep.subr.mxu0 0.0
    %1001 = vmatpush1.msra.mxu0 0.0
    %1002 = vmatprep.subr.mxu0 0.0
    %1003 = vmatpush1.msra.mxu0 0.0
    %1004 = vmatprep.subr.mxu0 0.0
    %1005 = vmatpush1.msra.mxu0 0.0
    %1006 = vmatprep.subr.mxu0 0.0
    %1007 = vmatpush1.msra.mxu0 0.0
    %1008 = vmatprep.subr.mxu0 0.0
    %1009 = vmatpush1.msra.mxu0 0.0
    %1010 = vmatprep.subr.mxu0 0.0
    %1011 = vmatpush1.msra.mxu0 0.0
    %1012 = vmatprep.subr.mxu0 0.0
    %1013 = vmatpush1.msra.mxu0 0.0
    %1014 = vmatprep.subr.mxu0 0.0
    %1015 = vmatpush1.msra.mxu0 0.0
    %1016 = vmatprep.subr.mxu0 0.0
    %1017 = vmatpush1.msra.mxu0 0.0
    %1018 = vmatprep.subr.mxu0 0.0
    %1019 = vmatpush1.msra.mxu0 0.0
    %1020 = vmatprep.subr.mxu0 0.0
    %1021 = vmatpush1.msra.mxu0 0.0
    %1022 = vmatprep.subr.mxu0 0.0
    %1023 = vmatpush1.msra.mxu0 0.0
    %1024 = vmatprep.subr.mxu0 0.0
    %1025 = vmatpush1.msra.mxu0 0.0
    %1026 = vmatprep.subr.mxu0 0.0
    %1027 = vmatpush1.msra.mxu0 0.0
    %1028 = vmatprep.subr.mxu0 0.0
    %1029 = vmatpush1.msra.mxu0 0.0
    %1030 = vmatprep.subr.mxu0 0.0
    %1031 = vmatpush1.msra.mxu0 0.0
    %1032 = vmatprep.subr.mxu0 0.0
    %1033 = vmatpush1.msra.mxu0 0.0
    %1034 = vmatprep.subr.mxu0 0.0
    %1035 = vmatpush1.msra.mxu0 0.0
    %1036 = vmatprep.subr.mxu0 0.0
    %1037 = vmatpush1.msra.mxu0 0.0
    %1038 = vmatprep.subr.mxu0 0.0
    %1039 = vmatpush1.msra.mxu0 0.0
    %1040 = vmatprep.subr.mxu0 0.0
    %1041 = vmatpush1.msra.mxu0 0.0
    %1042 = vmatprep.subr.mxu0 0.0
    %1043 = vmatpush1.msra.mxu0 0.0
    %1044 = vmatprep.subr.mxu0 0.0
    %1045 = vmatpush1.msra.mxu0 0.0
    %1046 = vmatprep.subr.mxu0 0.0
    %1047 = vmatpush1.msra.mxu0 0.0
    %1048 = vmatprep.subr.mxu0 0.0
    %1049 = vmatpush1.msra.mxu0 0.0
    %1050 = vmatprep.mubr.f32.mxu0 0.0
    %1051 = vmatmul.mubr.f32.gmra.mrb[0].mxu0 %v984
    %v1052 = vpop.f32.mrb[0].mxu0
    %v1053 = vadd.f32 0.0, %v1052
    %v1054 = vpop.f32.mrb[0].mxu0
    %1055 = vdwg.mxu0
    %v1057 = vsel %vm469, %v973, 0
    %1059 = vmatprep.subr.mxu0 0.0
    %1060 = vmatpush1.msra.mxu0 %v974
    %1061 = vmatprep.subr.mxu0 0.0
    %1062 = vmatpush1.msra.mxu0 %v975
    %1063 = vmatprep.subr.mxu0 0.0
    %1064 = vmatpush1.msra.mxu0 %v976
    %1065 = vmatprep.subr.mxu0 0.0
    %1066 = vmatpush1.msra.mxu0 %v977
    %1067 = vmatprep.subr.mxu0 0.0
    %1068 = vmatpush1.msra.mxu0 0.0
    %1069 = vmatprep.subr.mxu0 0.0
    %1070 = vmatpush1.msra.mxu0 0.0
    %1071 = vmatprep.subr.mxu0 0.0
    %1072 = vmatpush1.msra.mxu0 0.0
    %1073 = vmatprep.subr.mxu0 0.0
    %1074 = vmatpush1.msra.mxu0 0.0
    %1075 = vmatprep.subr.mxu0 0.0
    %1076 = vmatpush1.msra.mxu0 0.0
    %1077 = vmatprep.subr.mxu0 0.0
    %1078 = vmatpush1.msra.mxu0 0.0
    %1079 = vmatprep.subr.mxu0 0.0
    %1080 = vmatpush1.msra.mxu0 0.0
    %1081 = vmatprep.subr.mxu0 0.0
    %1082 = vmatpush1.msra.mxu0 0.0
    %1083 = vmatprep.subr.mxu0 0.0
    %1084 = vmatpush1.msra.mxu0 0.0
    %1085 = vmatprep.subr.mxu0 0.0
    %1086 = vmatpush1.msra.mxu0 0.0
    %1087 = vmatprep.subr.mxu0 0.0
    %1088 = vmatpush1.msra.mxu0 0.0
    %1089 = vmatprep.subr.mxu0 0.0
    %1090 = vmatpush1.msra.mxu0 0.0
    %1091 = vmatprep.subr.mxu0 0.0
    %1092 = vmatpush1.msra.mxu0 0.0
    %1093 = vmatprep.subr.mxu0 0.0
    %1094 = vmatpush1.msra.mxu0 0.0
    %1095 = vmatprep.subr.mxu0 0.0
    %1096 = vmatpush1.msra.mxu0 0.0
    %1097 = vmatprep.subr.mxu0 0.0
    %1098 = vmatpush1.msra.mxu0 0.0
    %1099 = vmatprep.subr.mxu0 0.0
    %1100 = vmatpush1.msra.mxu0 0.0
    %1101 = vmatprep.subr.mxu0 0.0
    %1102 = vmatpush1.msra.mxu0 0.0
    %1103 = vmatprep.subr.mxu0 0.0
    %1104 = vmatpush1.msra.mxu0 0.0
    %1105 = vmatprep.subr.mxu0 0.0
    %1106 = vmatpush1.msra.mxu0 0.0
    %1107 = vmatprep.subr.mxu0 0.0
    %1108 = vmatpush1.msra.mxu0 0.0
    %1109 = vmatprep.subr.mxu0 0.0
    %1110 = vmatpush1.msra.mxu0 0.0
    %1111 = vmatprep.subr.mxu0 0.0
    %1112 = vmatpush1.msra.mxu0 0.0
    %1113 = vmatprep.subr.mxu0 0.0
    %1114 = vmatpush1.msra.mxu0 0.0
    %1115 = vmatprep.subr.mxu0 0.0
    %1116 = vmatpush1.msra.mxu0 0.0
    %1117 = vmatprep.subr.mxu0 0.0
    %1118 = vmatpush1.msra.mxu0 0.0
    %1119 = vmatprep.subr.mxu0 0.0
    %1120 = vmatpush1.msra.mxu0 0.0
    %1121 = vmatprep.subr.mxu0 0.0
    %1122 = vmatpush1.msra.mxu0 0.0
    %1123 = vmatprep.mubr.f32.mxu0 0.0
    %1124 = vmatmul.mubr.f32.gmra.mrb[0].mxu0 %v1057
    %v1125 = vpop.f32.mrb[0].mxu0
    %v1126 = vadd.f32 %v1053, %v1125
    %v1127 = vpop.f32.mrb[0].mxu0
    %1128 = vdwg.mxu0
    %v1129 = vmul.f32 %v1126, %v1126
    %v1130 = vld [vmem:[%s8] sm:$0xff]
    %v1131 = vld [vmem:[%s8 + $0x8] sm:$0xff]
    %v1132 = vld [vmem:[%s8 + $0x10] sm:$0xff]
    %v1133 = vld [vmem:[%s8 + $0x18] sm:$0xff]
    %v1134 = vld [vmem:[%s8 + $0x20] sm:$0xff]
    %v1135 = vld [vmem:[%s8 + $0x28] sm:$0xff]
    %v1136 = vld [vmem:[%s8 + $0x30] sm:$0xff]
    %v1137 = vld [vmem:[%s8 + $0x38] sm:$0xff]
    %v1138 = vld [vmem:[%s9] sm:$0x3]
    %v1140 = vlaneseq
    %v1141 = vshrl.u32 %v1140, 7
    %v1142 = vsub.s32 0, %v1141
    %v1143 = vrot.slane %v1138, %v1142
    %v1144 = vlaneseq
    %v1145 = vshrl.u32 %v1144, 7
    %v1146 = vsub.s32 1, %v1145
    %v1147 = vrot.slane %v1138, %v1146
    %v1151 = vsel %vm469, %v1129, 0
    %1153 = vmatprep.subr.mxu0 %v1131
    %1154 = vmatpush1.msra.mxu0 %v1130
    %1155 = vmatprep.subr.mxu0 %v1133
    %1156 = vmatpush1.msra.mxu0 %v1132
    %1157 = vmatprep.subr.mxu0 %v1135
    %1158 = vmatpush1.msra.mxu0 %v1134
    %1159 = vmatprep.subr.mxu0 %v1137
    %1160 = vmatpush1.msra.mxu0 %v1136
    %1161 = vmatprep.subr.mxu0 0.0
    %1162 = vmatpush1.msra.mxu0 0.0
    %1163 = vmatprep.subr.mxu0 0.0
    %1164 = vmatpush1.msra.mxu0 0.0
    %1165 = vmatprep.subr.mxu0 0.0
    %1166 = vmatpush1.msra.mxu0 0.0
    %1167 = vmatprep.subr.mxu0 0.0
    %1168 = vmatpush1.msra.mxu0 0.0
    %1169 = vmatprep.subr.mxu0 0.0
    %1170 = vmatpush1.msra.mxu0 0.0
    %1171 = vmatprep.subr.mxu0 0.0
    %1172 = vmatpush1.msra.mxu0 0.0
    %1173 = vmatprep.subr.mxu0 0.0
    %1174 = vmatpush1.msra.mxu0 0.0
    %1175 = vmatprep.subr.mxu0 0.0
    %1176 = vmatpush1.msra.mxu0 0.0
    %1177 = vmatprep.subr.mxu0 0.0
    %1178 = vmatpush1.msra.mxu0 0.0
    %1179 = vmatprep.subr.mxu0 0.0
    %1180 = vmatpush1.msra.mxu0 0.0
    %1181 = vmatprep.subr.mxu0 0.0
    %1182 = vmatpush1.msra.mxu0 0.0
    %1183 = vmatprep.subr.mxu0 0.0
    %1184 = vmatpush1.msra.mxu0 0.0
    %1185 = vmatprep.subr.mxu0 0.0
    %1186 = vmatpush1.msra.mxu0 0.0
    %1187 = vmatprep.subr.mxu0 0.0
    %1188 = vmatpush1.msra.mxu0 0.0
    %1189 = vmatprep.subr.mxu0 0.0
    %1190 = vmatpush1.msra.mxu0 0.0
    %1191 = vmatprep.subr.mxu0 0.0
    %1192 = vmatpush1.msra.mxu0 0.0
    %1193 = vmatprep.subr.mxu0 0.0
    %1194 = vmatpush1.msra.mxu0 0.0
    %1195 = vmatprep.subr.mxu0 0.0
    %1196 = vmatpush1.msra.mxu0 0.0
    %1197 = vmatprep.subr.mxu0 0.0
    %1198 = vmatpush1.msra.mxu0 0.0
    %1199 = vmatprep.subr.mxu0 0.0
    %1200 = vmatpush1.msra.mxu0 0.0
    %1201 = vmatprep.subr.mxu0 0.0
    %1202 = vmatpush1.msra.mxu0 0.0
    %1203 = vmatprep.subr.mxu0 0.0
    %1204 = vmatpush1.msra.mxu0 0.0
    %1205 = vmatprep.subr.mxu0 0.0
    %1206 = vmatpush1.msra.mxu0 0.0
    %1207 = vmatprep.subr.mxu0 0.0
    %1208 = vmatpush1.msra.mxu0 0.0
    %1209 = vmatprep.subr.mxu0 0.0
    %1210 = vmatpush1.msra.mxu0 0.0
    %1211 = vmatprep.subr.mxu0 0.0
    %1212 = vmatpush1.msra.mxu0 0.0
    %1213 = vmatprep.subr.mxu0 0.0
    %1214 = vmatpush1.msra.mxu0 0.0
    %1215 = vmatprep.subr.mxu0 0.0
    %1216 = vmatpush1.msra.mxu0 0.0
    %1217 = vmatprep.mubr.f32.mxu0 0.0
    %1218 = vmatmul.mubr.f32.gmra.mrb[0].mxu0 %v1151
    %v1219 = vpop.f32.mrb[0].mxu0
    %v1220 = vadd.f32 %v1143, %v1219
    %v1221 = vpop.f32.mrb[0].mxu0
    %v1222 = vadd.f32 %v1147, %v1221
    %1223 = vdwg.mxu0
    %1224 = vst [vmem:[#allocation2] sm:$0xff] %v1220
    %1225 = vst [vmem:[#allocation2 + $0x8] sm:$0xff] %v1222
    // Predicated region
    $region42: #{tpu_custom_call.1} parent=1 // pred_check
      _
    $region43: #{tpu_custom_call.1} parent=1 // pred_check_branch
      %1227 = sbr.rel (0) target = $region45
    $region44: #{tpu_custom_call.1} parent=1 // pred_region
      %s1229 = ssub.s32 256, 256
      %1230 = vsyncadd [#allocation3], %s1229
      %s1232 = sshll.u32 [#allocation2], 4
      %s1233 = int_to_ptr.vmem [resolvable:$true] %s1232
      %1235 = dma.vmem_to_hbm [thread:$0]  %s1233, 256, %s10, [#allocation3]
    $region45: #{tpu_custom_call.1} parent=1 // pred_fallthru
      _
    // Predicated region
    $region46: #{tpu_custom_call.1} parent=1 // pred_check
      _
    $region47: #{tpu_custom_call.1} parent=1 // pred_check_branch
      %1237 = sbr.rel (0) target = $region49
    $region48: #{tpu_custom_call.1} parent=1 // pred_region
      %1238 = dma.done [#allocation3], 256
    $region49: #{tpu_custom_call.1} parent=1 // pred_fallthru
      _
    %1239 = vsyncpa [#allocation3], 1

</llo_original>
